<compile_context>
chip_gen: v7x
topology: tpu7x:2x2x1
jax: 0.10.0
libtpu: 0.0.40
codegen_flags: <defaults>
</compile_context>

<pallas_src>
import functools

import jax
import jax.numpy as jnp
from jax import lax
from jax.experimental import pallas as pl
from jax.experimental.pallas import tpu as pltpu

NEG_INF = -1e9   # matches masked_fill(mask == 0, -1e9) in the PyTorch module


# ---------------------------------------------------------------------------
# Kernel: full multi-head attention for ONE batch element per grid step.
# ---------------------------------------------------------------------------
def _mha_kernel(q_in_ref, k_in_ref, v_in_ref, mask_ref,
                wq_ref, bq_ref, wk_ref, bk_ref, wv_ref, bv_ref,
                wo_ref, bo_ref,
                out_ref, attn_ref, *, n_heads):
    """Block shapes (per grid step b; NH = n_heads, DK = D // NH):

    q_in_ref : (1, Sq, IN)     k_in_ref / v_in_ref : (1, Sk, IN)
    mask_ref : (1, 1, Sk)      key mask (1 = keep) for this batch element
    wq/wk/wv : (IN, D)         bq/bk/bv : (1, D)
    wo       : (D, D)          bo       : (1, D)
    out_ref  : (1, Sq, D)      attn_ref : (1, NH, Sq, Sk)
    """
    d = wq_ref.shape[1]
    dk = d // n_heads
    scale = 1.0 / jnp.sqrt(jnp.float32(dk))

    q_in = q_in_ref[0]                       # (Sq, IN)
    k_in = k_in_ref[0]                       # (Sk, IN)
    v_in = v_in_ref[0]                       # (Sk, IN)
    key_mask = mask_ref[0]                   # (1, Sk)

    # ---- full-width projections: MXU sees N = d_model (not d_k), inputs loaded once.
    q = jnp.dot(q_in, wq_ref[...], preferred_element_type=jnp.float32) + bq_ref[...]
    k = jnp.dot(k_in, wk_ref[...], preferred_element_type=jnp.float32) + bk_ref[...]
    v = jnp.dot(v_in, wv_ref[...], preferred_element_type=jnp.float32) + bv_ref[...]

    # Fold the 1/sqrt(d_k) scale into q (Sq*D elements) instead of scaling scores.
    q = q * scale

    # ---- per-head attention; heads are DK-wide lane slices of the projections.
    ctx_heads = []
    for h in range(n_heads):                                   # static unroll (NH small)
        sl = slice(h * dk, (h + 1) * dk)
        qh, kh, vh = q[:, sl], k[:, sl], v[:, sl]               # (Sq/Sk, DK) lane slices
        # scores_h = qh @ kh^T : contract d_k; transpose folded into dot_general.
        s = lax.dot_general(qh, kh, (((1,), (1,)), ((), ())),
                            preferred_element_type=jnp.float32)  # (Sq, Sk)
        s = jnp.where(key_mask == 0.0, NEG_INF, s)
        s = s - jnp.max(s, axis=-1, keepdims=True)
        e = jnp.exp(s)
        # EUP reciprocal instead of a VPU divide on the score-sized tensor.
        p = e * pl.reciprocal(jnp.sum(e, axis=-1, keepdims=True), approx=True)
        # p == self.attn[b, h]; dropout is identity in eval mode.
        attn_ref[0, h] = p
        ctx_heads.append(jnp.dot(p, vh, preferred_element_type=jnp.float32))

    # ---- concat heads along lanes -> (Sq, D), one full-width output projection.
    x = jnp.concatenate(ctx_heads, axis=-1)
    out_ref[0] = jnp.dot(x, wo_ref[...], preferred_element_type=jnp.float32) + bo_ref[...]


# ---------------------------------------------------------------------------
# Wrapper
# ---------------------------------------------------------------------------
def multi_headed_attention(query, key, value, mask, params, *, n_heads):
    """MultiHeadedAttention.forward (eval mode).

    query: (B, Sq, IN); key/value: (B, Sk, IN); mask: (B, Sk) with 1 = keep, or None.
    params: wq/wk/wv/wo stored as (in, out) so the kernel computes x @ W + b
            (already transposed relative to torch's nn.Linear (out, in) layout);
            biases stored as (1, out).
    Returns (out (B, Sq, D), attn (B, NH, Sq, Sk))   [attn == module's self.attn]
    """
    B, Sq, IN = query.shape
    _, Sk, _ = key.shape
    D = params["wo"].shape[1]
    assert D % n_heads == 0

    if mask is None:
        mask3 = jnp.ones((B, 1, Sk), jnp.float32)
    else:
        mask3 = mask.astype(jnp.float32).reshape(B, 1, Sk)

    bq = params["bq"].reshape(1, D)
    bk = params["bk"].reshape(1, D)
    bv = params["bv"].reshape(1, D)
    bo = params["bo"].reshape(1, D)

    def full(shape):   # block-index-invariant across the grid -> fetched once
        return pl.BlockSpec(shape, lambda b, _s=shape: (0,) * len(_s))

    out, attn = pl.pallas_call(
        functools.partial(_mha_kernel, n_heads=n_heads),
        grid=(B,),
        in_specs=[
            pl.BlockSpec((1, Sq, IN), lambda b: (b, 0, 0)),   # query
            pl.BlockSpec((1, Sk, IN), lambda b: (b, 0, 0)),   # key
            pl.BlockSpec((1, Sk, IN), lambda b: (b, 0, 0)),   # value
            pl.BlockSpec((1, 1, Sk), lambda b: (b, 0, 0)),    # key mask
            full(params["wq"].shape), full(bq.shape),
            full(params["wk"].shape), full(bk.shape),
            full(params["wv"].shape), full(bv.shape),
            full(params["wo"].shape), full(bo.shape),
        ],
        out_specs=(
            pl.BlockSpec((1, Sq, D), lambda b: (b, 0, 0)),
            pl.BlockSpec((1, n_heads, Sq, Sk), lambda b: (b, 0, 0, 0)),
        ),
        out_shape=(
            jax.ShapeDtypeStruct((B, Sq, D), jnp.float32),
            jax.ShapeDtypeStruct((B, n_heads, Sq, Sk), jnp.float32),
        ),
        compiler_params=pltpu.CompilerParams(
            dimension_semantics=("parallel",)),   # batch axis shards across TCs on v7x
    )(query, key, value, mask3,
      params["wq"], bq, params["wk"], bk, params["wv"], bv, params["wo"], bo)

    return out, attn


# ---------------------------------------------------------------------------
# Pure-JAX reference (mirrors the PyTorch module) for correctness checking
# ---------------------------------------------------------------------------
def reference_mha(query, key, value, mask, params, *, n_heads):
    B, Sq, _ = query.shape
    Sk = key.shape[1]
    D = params["wo"].shape[1]
    dk = D // n_heads
    q = query @ params["wq"] + params["bq"]
    k = key @ params["wk"] + params["bk"]
    v = value @ params["wv"] + params["bv"]
    split = lambda x, S: x.reshape(B, S, n_heads, dk).transpose(0, 2, 1, 3)
    qh, kh, vh = split(q, Sq), split(k, Sk), split(v, Sk)
    scores = jnp.einsum("bhqd,bhkd->bhqk", qh, kh) / jnp.sqrt(jnp.float32(dk))
    if mask is not None:
        scores = jnp.where(mask[:, None, None, :] == 0, NEG_INF, scores)
    attn = jax.nn.softmax(scores, axis=-1)
    x = jnp.einsum("bhqk,bhkd->bhqd", attn, vh).transpose(0, 2, 1, 3).reshape(B, Sq, D)
    out = x @ params["wo"] + params["bo"]
    return out, attn


if __name__ == "__main__":
    B, S, IN, D, NH = 2, 8, 32, 32, 4

    key = jax.random.PRNGKey(0)
    ks = jax.random.split(key, 12)
    nrm = lambda k, shp, s=0.1: (s * jax.random.normal(k, shp)).astype(jnp.float32)
    params = {
        "wq": nrm(ks[0], (IN, D)), "bq": nrm(ks[1], (1, D)),
        "wk": nrm(ks[2], (IN, D)), "bk": nrm(ks[3], (1, D)),
        "wv": nrm(ks[4], (IN, D)), "bv": nrm(ks[5], (1, D)),
        "wo": nrm(ks[6], (D, D)),  "bo": nrm(ks[7], (1, D)),
    }

    x = jax.random.normal(ks[8], (B, S, IN), dtype=jnp.float32)
    mask = jax.random.bernoulli(ks[9], 0.8, (B, S)).astype(jnp.float32)
    mask = mask.at[:, 0].set(1.0)   # guarantee at least one valid key per row

    fwd = jax.jit(functools.partial(multi_headed_attention, n_heads=NH))
    out, attn = fwd(x, x, x, mask, params)       # self-attention, as used in PAN_model
    jax.block_until_ready((out, attn))

    ref_out, ref_attn = reference_mha(x, x, x, mask, params, n_heads=NH)

    assert out.shape == (B, S, D)
    assert attn.shape == (B, NH, S, S)
    # Tolerance covers the approximate EUP reciprocal used for the softmax divide.
    assert jnp.allclose(out, ref_out, rtol=5e-3, atol=5e-3), \
        float(jnp.max(jnp.abs(out - ref_out)))
    assert jnp.allclose(attn, ref_attn, rtol=5e-3, atol=5e-3), \
        float(jnp.max(jnp.abs(attn - ref_attn)))

    print("KERNEL_OK")
</pallas_src>

<mosaic_0001>
module attributes {stable_mosaic.version = 11 : i64} {
  func.func @_mha_kernel(%arg0: i32, %arg1: memref<1x8x32xf32, #tpu.memory_space<vmem>>, %arg2: memref<1x8x32xf32, #tpu.memory_space<vmem>>, %arg3: memref<1x8x32xf32, #tpu.memory_space<vmem>>, %arg4: memref<1x1x8xf32, #tpu.memory_space<vmem>>, %arg5: memref<32x32xf32, #tpu.memory_space<vmem>>, %arg6: memref<1x32xf32, #tpu.memory_space<vmem>>, %arg7: memref<32x32xf32, #tpu.memory_space<vmem>>, %arg8: memref<1x32xf32, #tpu.memory_space<vmem>>, %arg9: memref<32x32xf32, #tpu.memory_space<vmem>>, %arg10: memref<1x32xf32, #tpu.memory_space<vmem>>, %arg11: memref<32x32xf32, #tpu.memory_space<vmem>>, %arg12: memref<1x32xf32, #tpu.memory_space<vmem>>, %arg13: memref<1x8x32xf32, #tpu.memory_space<vmem>>, %arg14: memref<1x4x8x8xf32, #tpu.memory_space<vmem>>) attributes {dimension_semantics = [#tpu.dimension_semantics<parallel>], iteration_bounds = array<i64: 2>, scalar_prefetch = 0 : i64, scratch_operands = 0 : i64, tpu.core_type = #tpu.core_type<tc>, window_params = [{transform_indices = @transform_0, window_bounds = array<i64: 1, 8, 32>}, {transform_indices = @transform_1, window_bounds = array<i64: 1, 8, 32>}, {transform_indices = @transform_2, window_bounds = array<i64: 1, 8, 32>}, {transform_indices = @transform_3, window_bounds = array<i64: 1, 1, 8>}, {pipeline_mode = #tpu.pipeline_mode<synchronous>, transform_indices = @transform_4, window_bounds = array<i64: 32, 32>}, {pipeline_mode = #tpu.pipeline_mode<synchronous>, transform_indices = @transform_5, window_bounds = array<i64: 1, 32>}, {pipeline_mode = #tpu.pipeline_mode<synchronous>, transform_indices = @transform_6, window_bounds = array<i64: 32, 32>}, {pipeline_mode = #tpu.pipeline_mode<synchronous>, transform_indices = @transform_7, window_bounds = array<i64: 1, 32>}, {pipeline_mode = #tpu.pipeline_mode<synchronous>, transform_indices = @transform_8, window_bounds = array<i64: 32, 32>}, {pipeline_mode = #tpu.pipeline_mode<synchronous>, transform_indices = @transform_9, window_bounds = array<i64: 1, 32>}, {pipeline_mode = #tpu.pipeline_mode<synchronous>, transform_indices = @transform_10, window_bounds = array<i64: 32, 32>}, {pipeline_mode = #tpu.pipeline_mode<synchronous>, transform_indices = @transform_11, window_bounds = array<i64: 1, 32>}, {transform_indices = @transform_12, window_bounds = array<i64: 1, 8, 32>}, {transform_indices = @transform_13, window_bounds = array<i64: 1, 4, 8, 8>}]} {
    %cst = arith.constant 8.000000e+00 : f32
    %0 = math.sqrt %cst : f32
    %cst_0 = arith.constant 1.000000e+00 : f32
    %1 = arith.divf %cst_0, %0 : f32
    %c0 = arith.constant 0 : index
    %c0_1 = arith.constant 0 : index
    %c0_2 = arith.constant 0 : index
    %2 = vector.load %arg1[%c0, %c0_1, %c0_2] : memref<1x8x32xf32, #tpu.memory_space<vmem>>, vector<1x8x32xf32>
    %3 = vector.shape_cast %2 : vector<1x8x32xf32> to vector<8x32xf32>
    %c0_3 = arith.constant 0 : index
    %c0_4 = arith.constant 0 : index
    %c0_5 = arith.constant 0 : index
    %4 = vector.load %arg2[%c0_3, %c0_4, %c0_5] : memref<1x8x32xf32, #tpu.memory_space<vmem>>, vector<1x8x32xf32>
    %5 = vector.shape_cast %4 : vector<1x8x32xf32> to vector<8x32xf32>
    %c0_6 = arith.constant 0 : index
    %c0_7 = arith.constant 0 : index
    %c0_8 = arith.constant 0 : index
    %6 = vector.load %arg3[%c0_6, %c0_7, %c0_8] : memref<1x8x32xf32, #tpu.memory_space<vmem>>, vector<1x8x32xf32>
    %7 = vector.shape_cast %6 : vector<1x8x32xf32> to vector<8x32xf32>
    %c0_9 = arith.constant 0 : index
    %c0_10 = arith.constant 0 : index
    %c0_11 = arith.constant 0 : index
    %8 = vector.load %arg4[%c0_9, %c0_10, %c0_11] : memref<1x1x8xf32, #tpu.memory_space<vmem>>, vector<1x1x8xf32>
    %9 = vector.shape_cast %8 : vector<1x1x8xf32> to vector<1x8xf32>
    %c0_12 = arith.constant 0 : index
    %c0_13 = arith.constant 0 : index
    %10 = vector.load %arg5[%c0_12, %c0_13] : memref<32x32xf32, #tpu.memory_space<vmem>>, vector<32x32xf32>
    %cst_14 = arith.constant dense<0.000000e+00> : vector<8x32xf32>
    %11 = tpu.matmul %3, %10, %cst_14 {dimension_numbers = #tpu.dot_dimension_numbers<[1], [0], [0], [1], [0, 0, 1, 1], [], []>} : vector<8x32xf32>, vector<32x32xf32>, vector<8x32xf32> -> vector<8x32xf32>
    %c0_15 = arith.constant 0 : index
    %c0_16 = arith.constant 0 : index
    %12 = vector.load %arg6[%c0_15, %c0_16] : memref<1x32xf32, #tpu.memory_space<vmem>>, vector<1x32xf32>
    %13 = vector.broadcast %12 : vector<1x32xf32> to vector<8x32xf32>
    %14 = arith.addf %11, %13 : vector<8x32xf32>
    %c0_17 = arith.constant 0 : index
    %c0_18 = arith.constant 0 : index
    %15 = vector.load %arg7[%c0_17, %c0_18] : memref<32x32xf32, #tpu.memory_space<vmem>>, vector<32x32xf32>
    %cst_19 = arith.constant dense<0.000000e+00> : vector<8x32xf32>
    %16 = tpu.matmul %5, %15, %cst_19 {dimension_numbers = #tpu.dot_dimension_numbers<[1], [0], [0], [1], [0, 0, 1, 1], [], []>} : vector<8x32xf32>, vector<32x32xf32>, vector<8x32xf32> -> vector<8x32xf32>
    %c0_20 = arith.constant 0 : index
    %c0_21 = arith.constant 0 : index
    %17 = vector.load %arg8[%c0_20, %c0_21] : memref<1x32xf32, #tpu.memory_space<vmem>>, vector<1x32xf32>
    %18 = vector.broadcast %17 : vector<1x32xf32> to vector<8x32xf32>
    %19 = arith.addf %16, %18 : vector<8x32xf32>
    %c0_22 = arith.constant 0 : index
    %c0_23 = arith.constant 0 : index
    %20 = vector.load %arg9[%c0_22, %c0_23] : memref<32x32xf32, #tpu.memory_space<vmem>>, vector<32x32xf32>
    %cst_24 = arith.constant dense<0.000000e+00> : vector<8x32xf32>
    %21 = tpu.matmul %7, %20, %cst_24 {dimension_numbers = #tpu.dot_dimension_numbers<[1], [0], [0], [1], [0, 0, 1, 1], [], []>} : vector<8x32xf32>, vector<32x32xf32>, vector<8x32xf32> -> vector<8x32xf32>
    %c0_25 = arith.constant 0 : index
    %c0_26 = arith.constant 0 : index
    %22 = vector.load %arg10[%c0_25, %c0_26] : memref<1x32xf32, #tpu.memory_space<vmem>>, vector<1x32xf32>
    %23 = vector.broadcast %22 : vector<1x32xf32> to vector<8x32xf32>
    %24 = arith.addf %21, %23 : vector<8x32xf32>
    %25 = vector.broadcast %1 : f32 to vector<8x32xf32>
    %26 = arith.mulf %14, %25 : vector<8x32xf32>
    %27 = vector.extract_strided_slice %26 {offsets = [0, 0], sizes = [8, 8], strides = [1, 1]} : vector<8x32xf32> to vector<8x8xf32>
    %28 = vector.extract_strided_slice %19 {offsets = [0, 0], sizes = [8, 8], strides = [1, 1]} : vector<8x32xf32> to vector<8x8xf32>
    %29 = vector.extract_strided_slice %24 {offsets = [0, 0], sizes = [8, 8], strides = [1, 1]} : vector<8x32xf32> to vector<8x8xf32>
    %cst_27 = arith.constant dense<0.000000e+00> : vector<8x8xf32>
    %30 = tpu.matmul %27, %28, %cst_27 {dimension_numbers = #tpu.dot_dimension_numbers<[1], [1], [0], [0], [0, 0, 1, 0], [], []>} : vector<8x8xf32>, vector<8x8xf32>, vector<8x8xf32> -> vector<8x8xf32>
    %cst_28 = arith.constant 0.000000e+00 : f32
    %31 = vector.broadcast %cst_28 : f32 to vector<1x8xf32>
    %32 = arith.cmpf oeq, %9, %31 : vector<1x8xf32>
    %cst_29 = arith.constant -1.000000e+09 : f32
    %33 = vector.shape_cast %32 : vector<1x8xi1> to vector<1x8xi1>
    %34 = vector.broadcast %33 : vector<1x8xi1> to vector<8x8xi1>
    %35 = vector.broadcast %cst_29 : f32 to vector<8x8xf32>
    %36 = arith.select %34, %35, %30 : vector<8x8xi1>, vector<8x8xf32>
    %cst_30 = arith.constant dense<0xFF800000> : vector<8xf32>
    %37 = vector.multi_reduction <maximumf>, %36, %cst_30 [1] : vector<8x8xf32> to vector<8xf32>
    %38 = vector.shape_cast %37 : vector<8xf32> to vector<8x1xf32>
    %39 = vector.broadcast %38 : vector<8x1xf32> to vector<8x8xf32>
    %40 = arith.subf %36, %39 : vector<8x8xf32>
    %41 = math.exp %40 : vector<8x8xf32>
    %cst_31 = arith.constant dense<0.000000e+00> : vector<8xf32>
    %42 = vector.multi_reduction <add>, %41, %cst_31 [1] : vector<8x8xf32> to vector<8xf32>
    %43 = vector.shape_cast %42 : vector<8xf32> to vector<8x1xf32>
    %44 = tpu.reciprocal %43 {approx = true} : vector<8x1xf32> -> vector<8x1xf32>
    %45 = vector.broadcast %44 : vector<8x1xf32> to vector<8x8xf32>
    %46 = arith.mulf %41, %45 : vector<8x8xf32>
    %c0_32 = arith.constant 0 : index
    %c0_33 = arith.constant 0 : index
    %c0_34 = arith.constant 0 : index
    %c0_35 = arith.constant 0 : index
    %47 = vector.load %arg14[%c0_32, %c0_33, %c0_34, %c0_35] : memref<1x4x8x8xf32, #tpu.memory_space<vmem>>, vector<1x1x8x8xf32>
    %48 = vector.shape_cast %47 : vector<1x1x8x8xf32> to vector<8x8xf32>
    %49 = vector.shape_cast %46 : vector<8x8xf32> to vector<1x1x8x8xf32>
    tpu.vector_store %arg14[%c0_32, %c0_33, %c0_34, %c0_35], %49 {strides = array<i32>} : memref<1x4x8x8xf32, #tpu.memory_space<vmem>>, vector<1x1x8x8xf32>,
    %cst_36 = arith.constant dense<0.000000e+00> : vector<8x8xf32>
    %50 = tpu.matmul %46, %29, %cst_36 {dimension_numbers = #tpu.dot_dimension_numbers<[1], [0], [0], [1], [0, 0, 1, 1], [], []>} : vector<8x8xf32>, vector<8x8xf32>, vector<8x8xf32> -> vector<8x8xf32>
    %51 = vector.extract_strided_slice %26 {offsets = [0, 8], sizes = [8, 8], strides = [1, 1]} : vector<8x32xf32> to vector<8x8xf32>
    %52 = vector.extract_strided_slice %19 {offsets = [0, 8], sizes = [8, 8], strides = [1, 1]} : vector<8x32xf32> to vector<8x8xf32>
    %53 = vector.extract_strided_slice %24 {offsets = [0, 8], sizes = [8, 8], strides = [1, 1]} : vector<8x32xf32> to vector<8x8xf32>
    %cst_37 = arith.constant dense<0.000000e+00> : vector<8x8xf32>
    %54 = tpu.matmul %51, %52, %cst_37 {dimension_numbers = #tpu.dot_dimension_numbers<[1], [1], [0], [0], [0, 0, 1, 0], [], []>} : vector<8x8xf32>, vector<8x8xf32>, vector<8x8xf32> -> vector<8x8xf32>
    %cst_38 = arith.constant 0.000000e+00 : f32
    %55 = vector.broadcast %cst_38 : f32 to vector<1x8xf32>
    %56 = arith.cmpf oeq, %9, %55 : vector<1x8xf32>
    %cst_39 = arith.constant -1.000000e+09 : f32
    %57 = vector.shape_cast %56 : vector<1x8xi1> to vector<1x8xi1>
    %58 = vector.broadcast %57 : vector<1x8xi1> to vector<8x8xi1>
    %59 = vector.broadcast %cst_39 : f32 to vector<8x8xf32>
    %60 = arith.select %58, %59, %54 : vector<8x8xi1>, vector<8x8xf32>
    %cst_40 = arith.constant dense<0xFF800000> : vector<8xf32>
    %61 = vector.multi_reduction <maximumf>, %60, %cst_40 [1] : vector<8x8xf32> to vector<8xf32>
    %62 = vector.shape_cast %61 : vector<8xf32> to vector<8x1xf32>
    %63 = vector.broadcast %62 : vector<8x1xf32> to vector<8x8xf32>
    %64 = arith.subf %60, %63 : vector<8x8xf32>
    %65 = math.exp %64 : vector<8x8xf32>
    %cst_41 = arith.constant dense<0.000000e+00> : vector<8xf32>
    %66 = vector.multi_reduction <add>, %65, %cst_41 [1] : vector<8x8xf32> to vector<8xf32>
    %67 = vector.shape_cast %66 : vector<8xf32> to vector<8x1xf32>
    %68 = tpu.reciprocal %67 {approx = true} : vector<8x1xf32> -> vector<8x1xf32>
    %69 = vector.broadcast %68 : vector<8x1xf32> to vector<8x8xf32>
    %70 = arith.mulf %65, %69 : vector<8x8xf32>
    %c0_42 = arith.constant 0 : index
    %c1 = arith.constant 1 : index
    %c0_43 = arith.constant 0 : index
    %c0_44 = arith.constant 0 : index
    %71 = vector.load %arg14[%c0_42, %c1, %c0_43, %c0_44] : memref<1x4x8x8xf32, #tpu.memory_space<vmem>>, vector<1x1x8x8xf32>
    %72 = vector.shape_cast %71 : vector<1x1x8x8xf32> to vector<8x8xf32>
    %73 = vector.shape_cast %70 : vector<8x8xf32> to vector<1x1x8x8xf32>
    tpu.vector_store %arg14[%c0_42, %c1, %c0_43, %c0_44], %73 {strides = array<i32>} : memref<1x4x8x8xf32, #tpu.memory_space<vmem>>, vector<1x1x8x8xf32>,
    %cst_45 = arith.constant dense<0.000000e+00> : vector<8x8xf32>
    %74 = tpu.matmul %70, %53, %cst_45 {dimension_numbers = #tpu.dot_dimension_numbers<[1], [0], [0], [1], [0, 0, 1, 1], [], []>} : vector<8x8xf32>, vector<8x8xf32>, vector<8x8xf32> -> vector<8x8xf32>
    %75 = vector.extract_strided_slice %26 {offsets = [0, 16], sizes = [8, 8], strides = [1, 1]} : vector<8x32xf32> to vector<8x8xf32>
    %76 = vector.extract_strided_slice %19 {offsets = [0, 16], sizes = [8, 8], strides = [1, 1]} : vector<8x32xf32> to vector<8x8xf32>
    %77 = vector.extract_strided_slice %24 {offsets = [0, 16], sizes = [8, 8], strides = [1, 1]} : vector<8x32xf32> to vector<8x8xf32>
    %cst_46 = arith.constant dense<0.000000e+00> : vector<8x8xf32>
    %78 = tpu.matmul %75, %76, %cst_46 {dimension_numbers = #tpu.dot_dimension_numbers<[1], [1], [0], [0], [0, 0, 1, 0], [], []>} : vector<8x8xf32>, vector<8x8xf32>, vector<8x8xf32> -> vector<8x8xf32>
    %cst_47 = arith.constant 0.000000e+00 : f32
    %79 = vector.broadcast %cst_47 : f32 to vector<1x8xf32>
    %80 = arith.cmpf oeq, %9, %79 : vector<1x8xf32>
    %cst_48 = arith.constant -1.000000e+09 : f32
    %81 = vector.shape_cast %80 : vector<1x8xi1> to vector<1x8xi1>
    %82 = vector.broadcast %81 : vector<1x8xi1> to vector<8x8xi1>
    %83 = vector.broadcast %cst_48 : f32 to vector<8x8xf32>
    %84 = arith.select %82, %83, %78 : vector<8x8xi1>, vector<8x8xf32>
    %cst_49 = arith.constant dense<0xFF800000> : vector<8xf32>
    %85 = vector.multi_reduction <maximumf>, %84, %cst_49 [1] : vector<8x8xf32> to vector<8xf32>
    %86 = vector.shape_cast %85 : vector<8xf32> to vector<8x1xf32>
    %87 = vector.broadcast %86 : vector<8x1xf32> to vector<8x8xf32>
    %88 = arith.subf %84, %87 : vector<8x8xf32>
    %89 = math.exp %88 : vector<8x8xf32>
    %cst_50 = arith.constant dense<0.000000e+00> : vector<8xf32>
    %90 = vector.multi_reduction <add>, %89, %cst_50 [1] : vector<8x8xf32> to vector<8xf32>
    %91 = vector.shape_cast %90 : vector<8xf32> to vector<8x1xf32>
    %92 = tpu.reciprocal %91 {approx = true} : vector<8x1xf32> -> vector<8x1xf32>
    %93 = vector.broadcast %92 : vector<8x1xf32> to vector<8x8xf32>
    %94 = arith.mulf %89, %93 : vector<8x8xf32>
    %c0_51 = arith.constant 0 : index
    %c2 = arith.constant 2 : index
    %c0_52 = arith.constant 0 : index
    %c0_53 = arith.constant 0 : index
    %95 = vector.load %arg14[%c0_51, %c2, %c0_52, %c0_53] : memref<1x4x8x8xf32, #tpu.memory_space<vmem>>, vector<1x1x8x8xf32>
    %96 = vector.shape_cast %95 : vector<1x1x8x8xf32> to vector<8x8xf32>
    %97 = vector.shape_cast %94 : vector<8x8xf32> to vector<1x1x8x8xf32>
    tpu.vector_store %arg14[%c0_51, %c2, %c0_52, %c0_53], %97 {strides = array<i32>} : memref<1x4x8x8xf32, #tpu.memory_space<vmem>>, vector<1x1x8x8xf32>,
    %cst_54 = arith.constant dense<0.000000e+00> : vector<8x8xf32>
    %98 = tpu.matmul %94, %77, %cst_54 {dimension_numbers = #tpu.dot_dimension_numbers<[1], [0], [0], [1], [0, 0, 1, 1], [], []>} : vector<8x8xf32>, vector<8x8xf32>, vector<8x8xf32> -> vector<8x8xf32>
    %99 = vector.extract_strided_slice %26 {offsets = [0, 24], sizes = [8, 8], strides = [1, 1]} : vector<8x32xf32> to vector<8x8xf32>
    %100 = vector.extract_strided_slice %19 {offsets = [0, 24], sizes = [8, 8], strides = [1, 1]} : vector<8x32xf32> to vector<8x8xf32>
    %101 = vector.extract_strided_slice %24 {offsets = [0, 24], sizes = [8, 8], strides = [1, 1]} : vector<8x32xf32> to vector<8x8xf32>
    %cst_55 = arith.constant dense<0.000000e+00> : vector<8x8xf32>
    %102 = tpu.matmul %99, %100, %cst_55 {dimension_numbers = #tpu.dot_dimension_numbers<[1], [1], [0], [0], [0, 0, 1, 0], [], []>} : vector<8x8xf32>, vector<8x8xf32>, vector<8x8xf32> -> vector<8x8xf32>
    %cst_56 = arith.constant 0.000000e+00 : f32
    %103 = vector.broadcast %cst_56 : f32 to vector<1x8xf32>
    %104 = arith.cmpf oeq, %9, %103 : vector<1x8xf32>
    %cst_57 = arith.constant -1.000000e+09 : f32
    %105 = vector.shape_cast %104 : vector<1x8xi1> to vector<1x8xi1>
    %106 = vector.broadcast %105 : vector<1x8xi1> to vector<8x8xi1>
    %107 = vector.broadcast %cst_57 : f32 to vector<8x8xf32>
    %108 = arith.select %106, %107, %102 : vector<8x8xi1>, vector<8x8xf32>
    %cst_58 = arith.constant dense<0xFF800000> : vector<8xf32>
    %109 = vector.multi_reduction <maximumf>, %108, %cst_58 [1] : vector<8x8xf32> to vector<8xf32>
    %110 = vector.shape_cast %109 : vector<8xf32> to vector<8x1xf32>
    %111 = vector.broadcast %110 : vector<8x1xf32> to vector<8x8xf32>
    %112 = arith.subf %108, %111 : vector<8x8xf32>
    %113 = math.exp %112 : vector<8x8xf32>
    %cst_59 = arith.constant dense<0.000000e+00> : vector<8xf32>
    %114 = vector.multi_reduction <add>, %113, %cst_59 [1] : vector<8x8xf32> to vector<8xf32>
    %115 = vector.shape_cast %114 : vector<8xf32> to vector<8x1xf32>
    %116 = tpu.reciprocal %115 {approx = true} : vector<8x1xf32> -> vector<8x1xf32>
    %117 = vector.broadcast %116 : vector<8x1xf32> to vector<8x8xf32>
    %118 = arith.mulf %113, %117 : vector<8x8xf32>
    %c0_60 = arith.constant 0 : index
    %c3 = arith.constant 3 : index
    %c0_61 = arith.constant 0 : index
    %c0_62 = arith.constant 0 : index
    %119 = vector.load %arg14[%c0_60, %c3, %c0_61, %c0_62] : memref<1x4x8x8xf32, #tpu.memory_space<vmem>>, vector<1x1x8x8xf32>
    %120 = vector.shape_cast %119 : vector<1x1x8x8xf32> to vector<8x8xf32>
    %121 = vector.shape_cast %118 : vector<8x8xf32> to vector<1x1x8x8xf32>
    tpu.vector_store %arg14[%c0_60, %c3, %c0_61, %c0_62], %121 {strides = array<i32>} : memref<1x4x8x8xf32, #tpu.memory_space<vmem>>, vector<1x1x8x8xf32>,
    %cst_63 = arith.constant dense<0.000000e+00> : vector<8x8xf32>
    %122 = tpu.matmul %118, %101, %cst_63 {dimension_numbers = #tpu.dot_dimension_numbers<[1], [0], [0], [1], [0, 0, 1, 1], [], []>} : vector<8x8xf32>, vector<8x8xf32>, vector<8x8xf32> -> vector<8x8xf32>
    %123 = tpu.concatenate %50, %74, %98, %122 in 1 : vector<8x8xf32>, vector<8x8xf32>, vector<8x8xf32>, vector<8x8xf32> -> vector<8x32xf32>
    %c0_64 = arith.constant 0 : index
    %c0_65 = arith.constant 0 : index
    %124 = vector.load %arg11[%c0_64, %c0_65] : memref<32x32xf32, #tpu.memory_space<vmem>>, vector<32x32xf32>
    %cst_66 = arith.constant dense<0.000000e+00> : vector<8x32xf32>
    %125 = tpu.matmul %123, %124, %cst_66 {dimension_numbers = #tpu.dot_dimension_numbers<[1], [0], [0], [1], [0, 0, 1, 1], [], []>} : vector<8x32xf32>, vector<32x32xf32>, vector<8x32xf32> -> vector<8x32xf32>
    %c0_67 = arith.constant 0 : index
    %c0_68 = arith.constant 0 : index
    %126 = vector.load %arg12[%c0_67, %c0_68] : memref<1x32xf32, #tpu.memory_space<vmem>>, vector<1x32xf32>
    %127 = vector.broadcast %126 : vector<1x32xf32> to vector<8x32xf32>
    %128 = arith.addf %125, %127 : vector<8x32xf32>
    %c0_69 = arith.constant 0 : index
    %c0_70 = arith.constant 0 : index
    %c0_71 = arith.constant 0 : index
    %129 = vector.load %arg13[%c0_69, %c0_70, %c0_71] : memref<1x8x32xf32, #tpu.memory_space<vmem>>, vector<1x8x32xf32>
    %130 = vector.shape_cast %129 : vector<1x8x32xf32> to vector<8x32xf32>
    %131 = vector.shape_cast %128 : vector<8x32xf32> to vector<1x8x32xf32>
    tpu.vector_store %arg13[%c0_69, %c0_70, %c0_71], %131 {strides = array<i32>} : memref<1x8x32xf32, #tpu.memory_space<vmem>>, vector<1x8x32xf32>,
    return
  }
  func.func @transform_0(%arg0: i32) -> (i32, i32, i32) {
    %c0_i32 = arith.constant 0 : i32
    %c0_i32_0 = arith.constant 0 : i32
    %c0_i32_1 = arith.constant 0 : i32
    return %arg0, %c0_i32, %c0_i32_0 : i32, i32, i32
  }
  func.func @transform_1(%arg0: i32) -> (i32, i32, i32) {
    %c0_i32 = arith.constant 0 : i32
    %c0_i32_0 = arith.constant 0 : i32
    %c0_i32_1 = arith.constant 0 : i32
    return %arg0, %c0_i32, %c0_i32_0 : i32, i32, i32
  }
  func.func @transform_2(%arg0: i32) -> (i32, i32, i32) {
    %c0_i32 = arith.constant 0 : i32
    %c0_i32_0 = arith.constant 0 : i32
    %c0_i32_1 = arith.constant 0 : i32
    return %arg0, %c0_i32, %c0_i32_0 : i32, i32, i32
  }
  func.func @transform_3(%arg0: i32) -> (i32, i32, i32) {
    %c0_i32 = arith.constant 0 : i32
    %c0_i32_0 = arith.constant 0 : i32
    %c0_i32_1 = arith.constant 0 : i32
    return %arg0, %c0_i32, %c0_i32_0 : i32, i32, i32
  }
  func.func @transform_4(%arg0: i32) -> (i32, i32) {
    %c0_i32 = arith.constant 0 : i32
    %c0_i32_0 = arith.constant 0 : i32
    %c0_i32_1 = arith.constant 0 : i32
    return %c0_i32, %c0_i32_0 : i32, i32
  }
  func.func @transform_5(%arg0: i32) -> (i32, i32) {
    %c0_i32 = arith.constant 0 : i32
    %c0_i32_0 = arith.constant 0 : i32
    %c0_i32_1 = arith.constant 0 : i32
    return %c0_i32, %c0_i32_0 : i32, i32
  }
  func.func @transform_6(%arg0: i32) -> (i32, i32) {
    %c0_i32 = arith.constant 0 : i32
    %c0_i32_0 = arith.constant 0 : i32
    %c0_i32_1 = arith.constant 0 : i32
    return %c0_i32, %c0_i32_0 : i32, i32
  }
  func.func @transform_7(%arg0: i32) -> (i32, i32) {
    %c0_i32 = arith.constant 0 : i32
    %c0_i32_0 = arith.constant 0 : i32
    %c0_i32_1 = arith.constant 0 : i32
    return %c0_i32, %c0_i32_0 : i32, i32
  }
  func.func @transform_8(%arg0: i32) -> (i32, i32) {
    %c0_i32 = arith.constant 0 : i32
    %c0_i32_0 = arith.constant 0 : i32
    %c0_i32_1 = arith.constant 0 : i32
    return %c0_i32, %c0_i32_0 : i32, i32
  }
  func.func @transform_9(%arg0: i32) -> (i32, i32) {
    %c0_i32 = arith.constant 0 : i32
    %c0_i32_0 = arith.constant 0 : i32
    %c0_i32_1 = arith.constant 0 : i32
    return %c0_i32, %c0_i32_0 : i32, i32
  }
  func.func @transform_10(%arg0: i32) -> (i32, i32) {
    %c0_i32 = arith.constant 0 : i32
    %c0_i32_0 = arith.constant 0 : i32
    %c0_i32_1 = arith.constant 0 : i32
    return %c0_i32, %c0_i32_0 : i32, i32
  }
  func.func @transform_11(%arg0: i32) -> (i32, i32) {
    %c0_i32 = arith.constant 0 : i32
    %c0_i32_0 = arith.constant 0 : i32
    %c0_i32_1 = arith.constant 0 : i32
    return %c0_i32, %c0_i32_0 : i32, i32
  }
  func.func @transform_12(%arg0: i32) -> (i32, i32, i32) {
    %c0_i32 = arith.constant 0 : i32
    %c0_i32_0 = arith.constant 0 : i32
    %c0_i32_1 = arith.constant 0 : i32
    return %arg0, %c0_i32, %c0_i32_0 : i32, i32, i32
  }
  func.func @transform_13(%arg0: i32) -> (i32, i32, i32, i32) {
    %c0_i32 = arith.constant 0 : i32
    %c0_i32_0 = arith.constant 0 : i32
    %c0_i32_1 = arith.constant 0 : i32
    %c0_i32_2 = arith.constant 0 : i32
    return %arg0, %c0_i32, %c0_i32_0, %c0_i32_1 : i32, i32, i32, i32
  }
}

</mosaic_0001>

<llo_original>
// kernel: multi_headed_attention.1
$region0: #{multi_headed_attention.1}
  #allocation0 [shape = 'u32[]', space=smem, size = 0x4, offset = 0x4, fixed_abs, tag = 'smem constant byte address 0x4 - core index']
  #allocation1 [shape = 'u32[144,128]{1,0:T(1,128)}', space=vmem, size = 0x12000, scoped, tag = 'internal scratch']
  %s0 = inlined_call_operand.hbm [shape: f32[2,8,32], index: 0, kind: input, shape index: {}]
  %s1 = inlined_call_operand.hbm [shape: f32[2,8,32], index: 1, kind: input, shape index: {}]
  %s2 = inlined_call_operand.hbm [shape: f32[2,8,32], index: 2, kind: input, shape index: {}]
  %s3 = inlined_call_operand.vmem [shape: f32[2,1,8], index: 3, kind: input, shape index: {}]
  %s4 = inlined_call_operand.vmem [shape: f32[32,32], index: 4, kind: input, shape index: {}]
  %s5 = inlined_call_operand.vmem [shape: f32[1,32], index: 5, kind: input, shape index: {}]
  %s6 = inlined_call_operand.hbm [shape: f32[32,32], index: 6, kind: input, shape index: {}]
  %s7 = inlined_call_operand.vmem [shape: f32[1,32], index: 7, kind: input, shape index: {}]
  %s8 = inlined_call_operand.hbm [shape: f32[32,32], index: 8, kind: input, shape index: {}]
  %s9 = inlined_call_operand.vmem [shape: f32[1,32], index: 9, kind: input, shape index: {}]
  %s10 = inlined_call_operand.hbm [shape: f32[32,32], index: 10, kind: input, shape index: {}]
  %s11 = inlined_call_operand.vmem [shape: f32[1,32], index: 11, kind: input, shape index: {}]
  %s12 = inlined_call_operand.hbm [shape: f32[2,8,32], index: 12, kind: output, shape index: {0}]
  %s13 = inlined_call_operand.hbm [shape: f32[2,4,8,8], index: 13, kind: output, shape index: {1}]
  %14 = xla_tuple %s12, %s13
  %s15 = sld [smem:[#allocation0]]
  $region113: #{multi_headed_attention.1} parent=0
    _
  %s17 = ssub.s32 1, %s15
  %s18 = scalar_select 0, %s17, %s15
  $region1: #{multi_headed_attention.1} parent=0
    #allocation2 [shape = 'u8[8192]{0}', space=vmem, size = 0x2000, scoped, tag = 'input window, operand 0']
    #allocation3 [shape = 's32[2]{0}', space=sflag, size = 0x8, scoped, tag = 'scoped memory for multi_headed_attention.1']
    #allocation4 [shape = 's32[2]{0}', space=sflag, size = 0x8, scoped, tag = 'scoped memory for multi_headed_attention.1']
    #allocation5 [shape = 'u8[8192]{0}', space=vmem, size = 0x2000, scoped, tag = 'input window, operand 1']
    #allocation6 [shape = 's32[2]{0}', space=sflag, size = 0x8, scoped, tag = 'scoped memory for multi_headed_attention.1']
    #allocation7 [shape = 'u8[8192]{0}', space=vmem, size = 0x2000, scoped, tag = 'input window, operand 2']
    #allocation8 [shape = 'u8[16384]{0}', space=vmem, size = 0x4000, scoped, tag = 'input window, operand 6, single buffered']
    #allocation9 [shape = 's32[1]{0}', space=sflag, size = 0x4, scoped, tag = 'scoped memory for multi_headed_attention.1']
    #allocation10 [shape = 'u8[16384]{0}', space=vmem, size = 0x4000, scoped, tag = 'input window, operand 8, single buffered']
    #allocation11 [shape = 'u8[16384]{0}', space=vmem, size = 0x4000, scoped, tag = 'input window, operand 10, single buffered']
    #allocation12 [shape = 's32[1]{0}', space=sflag, size = 0x4, scoped, tag = 'scoped memory for multi_headed_attention.1']
    #allocation13 [shape = 'u8[8192]{0}', space=vmem, size = 0x2000, scoped, tag = 'output window, operand 0']
    #allocation14 [shape = 'u8[32768]{0}', space=vmem, size = 0x8000, scoped, tag = 'output window, operand 1']
    #allocation15 [shape = 's32[2]{0}', space=sflag, size = 0x8, scoped, tag = 'scoped memory for multi_headed_attention.1']
    %19 = vsyncpa [#allocation3], 0
    %s20 = scalar_lea.sflag [#allocation3], 1
    %21 = vsyncpa %s20, 0
    %22 = vsyncpa [#allocation6], 0
    %s23 = scalar_lea.sflag [#allocation6], 1
    %24 = vsyncpa %s23, 0
    %25 = vsyncpa [#allocation9], 0
    %26 = vsyncpa [#allocation12], 0
    %27 = vsyncpa [#allocation4], 0
    %s28 = scalar_lea.sflag [#allocation4], 1
    %29 = vsyncpa %s28, 0
    %30 = vsyncpa [#allocation15], 0
    %s31 = scalar_lea.sflag [#allocation15], 1
    %32 = vsyncpa %s31, 0
    loop: start=0, step=1, limit=4
    $region2: #{multi_headed_attention.1} parent=1 // loop_pre_header
      _
    $region3: #{multi_headed_attention.1} parent=1 // loop_header
      %s34 = sphi 0, %s38
      %p35 = scmp.ge.s32.totalorder %s34, 4
      %s44 = sphi 0, %s46
      %s47 = sphi 0, %s44
      %s48 = sphi 0, %s47
      %s64 = sphi 0, %s48
      %s70 = sphi 0, %s72
      %s73 = sphi 0, %s70
      %s74 = sphi 0, %s73
      %s90 = sphi 0, %s74
      %s96 = sphi 0, %s98
      %s99 = sphi 0, %s96
      %s100 = sphi 0, %s99
      %s116 = sphi 0, %s100
      %s122 = sphi 0, %s124
      %s125 = sphi 0, %s122
      %s126 = sphi 0, %s125
      %s142 = sphi 0, %s126
      %s146 = sphi 0, %s146
      %s148 = sphi 0, %s146
      %s149 = sphi 0, %s148
      %s163 = sphi 0, %s149
      %s167 = sphi 0, %s167
      %s169 = sphi 0, %s167
      %s170 = sphi 0, %s169
      %s184 = sphi 0, %s170
      %s188 = sphi 0, %s188
      %s190 = sphi 0, %s188
      %s191 = sphi 0, %s190
      %s205 = sphi 0, %s191
      %s209 = sphi 0, %s209
      %s211 = sphi 0, %s209
      %s212 = sphi 0, %s211
      %s226 = sphi 0, %s212
      %s230 = sphi 0, %s230
      %s232 = sphi 0, %s230
      %s233 = sphi 0, %s232
      %s247 = sphi 0, %s233
      %s251 = sphi 0, %s251
      %s253 = sphi 0, %s251
      %s254 = sphi 0, %s253
      %s268 = sphi 0, %s254
      %s272 = sphi 0, %s272
      %s274 = sphi 0, %s272
      %s275 = sphi 0, %s274
      %s289 = sphi 0, %s275
      %s293 = sphi 0, %s293
      %s295 = sphi 0, %s293
      %s296 = sphi 0, %s295
      %s310 = sphi 0, %s296
      %s316 = sphi 0, %s318
      %s319 = sphi 0, %s316
      %s320 = sphi 0, %s319
      %s336 = sphi 0, %s320
      %s342 = sphi 0, %s344
      %s345 = sphi 0, %s342
      %s346 = sphi 0, %s345
      %s362 = sphi 0, %s346
    $region4: #{multi_headed_attention.1} parent=1 // loop_header_branch
      %37 = sbr.rel (%p35) target = $region8
    $region5: #{multi_headed_attention.1} parent=1 // loop_body
      %s39 = ssub.s32 %s34, 1
      %s40 = ssub.s32 %s34, 2
      %s41 = sadd.s32 %s34, 1
      %s42 = ssub.s32 %s34, %s41
      %p43 = scmp.eq.s32.totalorder %s42, 0
      %s45 = sadd.s32 %s44, 1
      %s46 = scalar_select %p43, %s44, %s45
      %p49 = pneg %p43
      %p50 = scmp.eq.s32.totalorder %s34, 1
      %p51 = por %p49, %p50
      %p52 = scmp.ne.s32.totalorder %s44, %s47
      %p53 = scmp.eq.s32.totalorder %s34, 0
      %p54 = por %p52, %p53
      %p55 = scmp.ne.s32.totalorder %s44, %s47
      %p56 = scmp.eq.s32.totalorder %s39, 1
      %p57 = por %p55, %p56
      %p58 = scmp.ne.s32.totalorder %s47, %s48
      %p59 = scmp.eq.s32.totalorder %s39, 0
      %p60 = por %p58, %p59
      %p61 = scmp.ne.s32.totalorder %s47, %s48
      %p62 = scmp.eq.s32.totalorder %s40, 1
      %p63 = por %p61, %p62
      %p65 = scmp.ne.s32.totalorder %s48, %s64
      %p66 = scmp.eq.s32.totalorder %s40, 0
      %p67 = por %p65, %p66
      %s68 = ssub.s32 %s34, %s41
      %p69 = scmp.eq.s32.totalorder %s68, 0
      %s71 = sadd.s32 %s70, 1
      %s72 = scalar_select %p69, %s70, %s71
      %p75 = pneg %p69
      %p76 = scmp.eq.s32.totalorder %s34, 1
      %p77 = por %p75, %p76
      %p78 = scmp.ne.s32.totalorder %s70, %s73
      %p79 = scmp.eq.s32.totalorder %s34, 0
      %p80 = por %p78, %p79
      %p81 = scmp.ne.s32.totalorder %s70, %s73
      %p82 = scmp.eq.s32.totalorder %s39, 1
      %p83 = por %p81, %p82
      %p84 = scmp.ne.s32.totalorder %s73, %s74
      %p85 = scmp.eq.s32.totalorder %s39, 0
      %p86 = por %p84, %p85
      %p87 = scmp.ne.s32.totalorder %s73, %s74
      %p88 = scmp.eq.s32.totalorder %s40, 1
      %p89 = por %p87, %p88
      %p91 = scmp.ne.s32.totalorder %s74, %s90
      %p92 = scmp.eq.s32.totalorder %s40, 0
      %p93 = por %p91, %p92
      %s94 = ssub.s32 %s34, %s41
      %p95 = scmp.eq.s32.totalorder %s94, 0
      %s97 = sadd.s32 %s96, 1
      %s98 = scalar_select %p95, %s96, %s97
      %p101 = pneg %p95
      %p102 = scmp.eq.s32.totalorder %s34, 1
      %p103 = por %p101, %p102
      %p104 = scmp.ne.s32.totalorder %s96, %s99
      %p105 = scmp.eq.s32.totalorder %s34, 0
      %p106 = por %p104, %p105
      %p107 = scmp.ne.s32.totalorder %s96, %s99
      %p108 = scmp.eq.s32.totalorder %s39, 1
      %p109 = por %p107, %p108
      %p110 = scmp.ne.s32.totalorder %s99, %s100
      %p111 = scmp.eq.s32.totalorder %s39, 0
      %p112 = por %p110, %p111
      %p113 = scmp.ne.s32.totalorder %s99, %s100
      %p114 = scmp.eq.s32.totalorder %s40, 1
      %p115 = por %p113, %p114
      %p117 = scmp.ne.s32.totalorder %s100, %s116
      %p118 = scmp.eq.s32.totalorder %s40, 0
      %p119 = por %p117, %p118
      %s120 = ssub.s32 %s34, %s41
      %p121 = scmp.eq.s32.totalorder %s120, 0
      %s123 = sadd.s32 %s122, 1
      %s124 = scalar_select %p121, %s122, %s123
      %p127 = pneg %p121
      %p128 = scmp.eq.s32.totalorder %s34, 1
      %p129 = por %p127, %p128
      %p130 = scmp.ne.s32.totalorder %s122, %s125
      %p131 = scmp.eq.s32.totalorder %s34, 0
      %p132 = por %p130, %p131
      %p133 = scmp.ne.s32.totalorder %s122, %s125
      %p134 = scmp.eq.s32.totalorder %s39, 1
      %p135 = por %p133, %p134
      %p136 = scmp.ne.s32.totalorder %s125, %s126
      %p137 = scmp.eq.s32.totalorder %s39, 0
      %p138 = por %p136, %p137
      %p139 = scmp.ne.s32.totalorder %s125, %s126
      %p140 = scmp.eq.s32.totalorder %s40, 1
      %p141 = por %p139, %p140
      %p143 = scmp.ne.s32.totalorder %s126, %s142
      %p144 = scmp.eq.s32.totalorder %s40, 0
      %p145 = por %p143, %p144
      %s147 = sadd.s32 %s146, 1
      %p150 = scmp.eq.s32.totalorder %s34, 1
      %p151 = scmp.ne.s32.totalorder %s146, %s148
      %p152 = scmp.eq.s32.totalorder %s34, 0
      %p153 = por %p151, %p152
      %p154 = scmp.ne.s32.totalorder %s146, %s148
      %p155 = scmp.eq.s32.totalorder %s39, 1
      %p156 = por %p154, %p155
      %p157 = scmp.ne.s32.totalorder %s148, %s149
      %p158 = scmp.eq.s32.totalorder %s39, 0
      %p159 = por %p157, %p158
      %p160 = scmp.ne.s32.totalorder %s148, %s149
      %p161 = scmp.eq.s32.totalorder %s40, 1
      %p162 = por %p160, %p161
      %p164 = scmp.ne.s32.totalorder %s149, %s163
      %p165 = scmp.eq.s32.totalorder %s40, 0
      %p166 = por %p164, %p165
      %s168 = sadd.s32 %s167, 1
      %p171 = scmp.eq.s32.totalorder %s34, 1
      %p172 = scmp.ne.s32.totalorder %s167, %s169
      %p173 = scmp.eq.s32.totalorder %s34, 0
      %p174 = por %p172, %p173
      %p175 = scmp.ne.s32.totalorder %s167, %s169
      %p176 = scmp.eq.s32.totalorder %s39, 1
      %p177 = por %p175, %p176
      %p178 = scmp.ne.s32.totalorder %s169, %s170
      %p179 = scmp.eq.s32.totalorder %s39, 0
      %p180 = por %p178, %p179
      %p181 = scmp.ne.s32.totalorder %s169, %s170
      %p182 = scmp.eq.s32.totalorder %s40, 1
      %p183 = por %p181, %p182
      %p185 = scmp.ne.s32.totalorder %s170, %s184
      %p186 = scmp.eq.s32.totalorder %s40, 0
      %p187 = por %p185, %p186
      %s189 = sadd.s32 %s188, 1
      %p192 = scmp.eq.s32.totalorder %s34, 1
      %p193 = scmp.ne.s32.totalorder %s188, %s190
      %p194 = scmp.eq.s32.totalorder %s34, 0
      %p195 = por %p193, %p194
      %p196 = scmp.ne.s32.totalorder %s188, %s190
      %p197 = scmp.eq.s32.totalorder %s39, 1
      %p198 = por %p196, %p197
      %p199 = scmp.ne.s32.totalorder %s190, %s191
      %p200 = scmp.eq.s32.totalorder %s39, 0
      %p201 = por %p199, %p200
      %p202 = scmp.ne.s32.totalorder %s190, %s191
      %p203 = scmp.eq.s32.totalorder %s40, 1
      %p204 = por %p202, %p203
      %p206 = scmp.ne.s32.totalorder %s191, %s205
      %p207 = scmp.eq.s32.totalorder %s40, 0
      %p208 = por %p206, %p207
      %s210 = sadd.s32 %s209, 1
      %p213 = scmp.eq.s32.totalorder %s34, 1
      %p214 = scmp.ne.s32.totalorder %s209, %s211
      %p215 = scmp.eq.s32.totalorder %s34, 0
      %p216 = por %p214, %p215
      %p217 = scmp.ne.s32.totalorder %s209, %s211
      %p218 = scmp.eq.s32.totalorder %s39, 1
      %p219 = por %p217, %p218
      %p220 = scmp.ne.s32.totalorder %s211, %s212
      %p221 = scmp.eq.s32.totalorder %s39, 0
      %p222 = por %p220, %p221
      %p223 = scmp.ne.s32.totalorder %s211, %s212
      %p224 = scmp.eq.s32.totalorder %s40, 1
      %p225 = por %p223, %p224
      %p227 = scmp.ne.s32.totalorder %s212, %s226
      %p228 = scmp.eq.s32.totalorder %s40, 0
      %p229 = por %p227, %p228
      %s231 = sadd.s32 %s230, 1
      %p234 = scmp.eq.s32.totalorder %s34, 1
      %p235 = scmp.ne.s32.totalorder %s230, %s232
      %p236 = scmp.eq.s32.totalorder %s34, 0
      %p237 = por %p235, %p236
      %p238 = scmp.ne.s32.totalorder %s230, %s232
      %p239 = scmp.eq.s32.totalorder %s39, 1
      %p240 = por %p238, %p239
      %p241 = scmp.ne.s32.totalorder %s232, %s233
      %p242 = scmp.eq.s32.totalorder %s39, 0
      %p243 = por %p241, %p242
      %p244 = scmp.ne.s32.totalorder %s232, %s233
      %p245 = scmp.eq.s32.totalorder %s40, 1
      %p246 = por %p244, %p245
      %p248 = scmp.ne.s32.totalorder %s233, %s247
      %p249 = scmp.eq.s32.totalorder %s40, 0
      %p250 = por %p248, %p249
      %s252 = sadd.s32 %s251, 1
      %p255 = scmp.eq.s32.totalorder %s34, 1
      %p256 = scmp.ne.s32.totalorder %s251, %s253
      %p257 = scmp.eq.s32.totalorder %s34, 0
      %p258 = por %p256, %p257
      %p259 = scmp.ne.s32.totalorder %s251, %s253
      %p260 = scmp.eq.s32.totalorder %s39, 1
      %p261 = por %p259, %p260
      %p262 = scmp.ne.s32.totalorder %s253, %s254
      %p263 = scmp.eq.s32.totalorder %s39, 0
      %p264 = por %p262, %p263
      %p265 = scmp.ne.s32.totalorder %s253, %s254
      %p266 = scmp.eq.s32.totalorder %s40, 1
      %p267 = por %p265, %p266
      %p269 = scmp.ne.s32.totalorder %s254, %s268
      %p270 = scmp.eq.s32.totalorder %s40, 0
      %p271 = por %p269, %p270
      %s273 = sadd.s32 %s272, 1
      %p276 = scmp.eq.s32.totalorder %s34, 1
      %p277 = scmp.ne.s32.totalorder %s272, %s274
      %p278 = scmp.eq.s32.totalorder %s34, 0
      %p279 = por %p277, %p278
      %p280 = scmp.ne.s32.totalorder %s272, %s274
      %p281 = scmp.eq.s32.totalorder %s39, 1
      %p282 = por %p280, %p281
      %p283 = scmp.ne.s32.totalorder %s274, %s275
      %p284 = scmp.eq.s32.totalorder %s39, 0
      %p285 = por %p283, %p284
      %p286 = scmp.ne.s32.totalorder %s274, %s275
      %p287 = scmp.eq.s32.totalorder %s40, 1
      %p288 = por %p286, %p287
      %p290 = scmp.ne.s32.totalorder %s275, %s289
      %p291 = scmp.eq.s32.totalorder %s40, 0
      %p292 = por %p290, %p291
      %s294 = sadd.s32 %s293, 1
      %p297 = scmp.eq.s32.totalorder %s34, 1
      %p298 = scmp.ne.s32.totalorder %s293, %s295
      %p299 = scmp.eq.s32.totalorder %s34, 0
      %p300 = por %p298, %p299
      %p301 = scmp.ne.s32.totalorder %s293, %s295
      %p302 = scmp.eq.s32.totalorder %s39, 1
      %p303 = por %p301, %p302
      %p304 = scmp.ne.s32.totalorder %s295, %s296
      %p305 = scmp.eq.s32.totalorder %s39, 0
      %p306 = por %p304, %p305
      %p307 = scmp.ne.s32.totalorder %s295, %s296
      %p308 = scmp.eq.s32.totalorder %s40, 1
      %p309 = por %p307, %p308
      %p311 = scmp.ne.s32.totalorder %s296, %s310
      %p312 = scmp.eq.s32.totalorder %s40, 0
      %p313 = por %p311, %p312
      %s314 = ssub.s32 %s34, %s41
      %p315 = scmp.eq.s32.totalorder %s314, 0
      %s317 = sadd.s32 %s316, 1
      %s318 = scalar_select %p315, %s316, %s317
      %p321 = pneg %p315
      %p322 = scmp.eq.s32.totalorder %s34, 1
      %p323 = por %p321, %p322
      %p324 = scmp.ne.s32.totalorder %s316, %s319
      %p325 = scmp.eq.s32.totalorder %s34, 0
      %p326 = por %p324, %p325
      %p327 = scmp.ne.s32.totalorder %s316, %s319
      %p328 = scmp.eq.s32.totalorder %s39, 1
      %p329 = por %p327, %p328
      %p330 = scmp.ne.s32.totalorder %s319, %s320
      %p331 = scmp.eq.s32.totalorder %s39, 0
      %p332 = por %p330, %p331
      %p333 = scmp.ne.s32.totalorder %s319, %s320
      %p334 = scmp.eq.s32.totalorder %s40, 1
      %p335 = por %p333, %p334
      %p337 = scmp.ne.s32.totalorder %s320, %s336
      %p338 = scmp.eq.s32.totalorder %s40, 0
      %p339 = por %p337, %p338
      %s340 = ssub.s32 %s34, %s41
      %p341 = scmp.eq.s32.totalorder %s340, 0
      %s343 = sadd.s32 %s342, 1
      %s344 = scalar_select %p341, %s342, %s343
      %p347 = pneg %p341
      %p348 = scmp.eq.s32.totalorder %s34, 1
      %p349 = por %p347, %p348
      %p350 = scmp.ne.s32.totalorder %s342, %s345
      %p351 = scmp.eq.s32.totalorder %s34, 0
      %p352 = por %p350, %p351
      %p353 = scmp.ne.s32.totalorder %s342, %s345
      %p354 = scmp.eq.s32.totalorder %s39, 1
      %p355 = por %p353, %p354
      %p356 = scmp.ne.s32.totalorder %s345, %s346
      %p357 = scmp.eq.s32.totalorder %s39, 0
      %p358 = por %p356, %p357
      %p359 = scmp.ne.s32.totalorder %s345, %s346
      %p360 = scmp.eq.s32.totalorder %s40, 1
      %p361 = por %p359, %p360
      %p363 = scmp.ne.s32.totalorder %s346, %s362
      %p364 = scmp.eq.s32.totalorder %s40, 0
      %p365 = por %p363, %p364
      %p366 = scmp.le.s32.totalorder 1, %s34
      %p367 = scmp.lt.s32.totalorder %s34, 3
      %p368 = pnand %p366, %p367
      %p369 = pneg %p368
      // Predicated region
      $region9: #{multi_headed_attention.1} parent=5 // pred_check
        _
      $region10: #{multi_headed_attention.1} parent=5 // pred_check_branch
        %371 = sbr.rel (%p368) target = $region12
      $region11: #{multi_headed_attention.1} parent=5 // pred_region
        %s372 = ssub.s32 %s34, 1
        // Predicated region
        $region13: #{multi_headed_attention.1} parent=11 // pred_check
          %p373 = pneg %p159
        $region14: #{multi_headed_attention.1} parent=11 // pred_check_branch
          %375 = sbr.rel (%p373) target = $region16
        $region15: #{multi_headed_attention.1} parent=11 // pred_region
          _
        $region16: #{multi_headed_attention.1} parent=11 // pred_fallthru
          _
        // Predicated region
        $region17: #{multi_headed_attention.1} parent=11 // pred_check
          %p376 = pneg %p180
        $region18: #{multi_headed_attention.1} parent=11 // pred_check_branch
          %378 = sbr.rel (%p376) target = $region20
        $region19: #{multi_headed_attention.1} parent=11 // pred_region
          _
        $region20: #{multi_headed_attention.1} parent=11 // pred_fallthru
          _
        // Predicated region
        $region21: #{multi_headed_attention.1} parent=11 // pred_check
          %p379 = pneg %p201
        $region22: #{multi_headed_attention.1} parent=11 // pred_check_branch
          %381 = sbr.rel (%p379) target = $region24
        $region23: #{multi_headed_attention.1} parent=11 // pred_region
          %s383 = ssub.s32 512, 512
          %384 = vsyncadd [#allocation9], %s383
          %s385 = sshll.u32 [#allocation8], 4
          %s386 = int_to_ptr.vmem [resolvable:$true] %s385
          %391 = dma.hbm_to_vmem [thread:$0]  %s6, 512, %s386, [#allocation9], 128, 128, 8
        $region24: #{multi_headed_attention.1} parent=11 // pred_fallthru
          _
        // Predicated region
        $region25: #{multi_headed_attention.1} parent=11 // pred_check
          %p392 = pneg %p222
        $region26: #{multi_headed_attention.1} parent=11 // pred_check_branch
          %394 = sbr.rel (%p392) target = $region28
        $region27: #{multi_headed_attention.1} parent=11 // pred_region
          _
        $region28: #{multi_headed_attention.1} parent=11 // pred_fallthru
          _
        // Predicated region
        $region29: #{multi_headed_attention.1} parent=11 // pred_check
          %p395 = pneg %p243
        $region30: #{multi_headed_attention.1} parent=11 // pred_check_branch
          %397 = sbr.rel (%p395) target = $region32
        $region31: #{multi_headed_attention.1} parent=11 // pred_region
          %s399 = ssub.s32 512, 512
          %400 = vsyncadd [#allocation9], %s399
          %s401 = sshll.u32 [#allocation10], 4
          %s402 = int_to_ptr.vmem [resolvable:$true] %s401
          %407 = dma.hbm_to_vmem [thread:$0]  %s8, 512, %s402, [#allocation9], 128, 128, 8
        $region32: #{multi_headed_attention.1} parent=11 // pred_fallthru
          _
        // Predicated region
        $region33: #{multi_headed_attention.1} parent=11 // pred_check
          %p408 = pneg %p264
        $region34: #{multi_headed_attention.1} parent=11 // pred_check_branch
          %410 = sbr.rel (%p408) target = $region36
        $region35: #{multi_headed_attention.1} parent=11 // pred_region
          _
        $region36: #{multi_headed_attention.1} parent=11 // pred_fallthru
          _
        // Predicated region
        $region37: #{multi_headed_attention.1} parent=11 // pred_check
          %p411 = pneg %p285
        $region38: #{multi_headed_attention.1} parent=11 // pred_check_branch
          %413 = sbr.rel (%p411) target = $region40
        $region39: #{multi_headed_attention.1} parent=11 // pred_region
          %s415 = ssub.s32 512, 512
          %416 = vsyncadd [#allocation12], %s415
          %s417 = sshll.u32 [#allocation11], 4
          %s418 = int_to_ptr.vmem [resolvable:$true] %s417
          %423 = dma.hbm_to_vmem [thread:$0]  %s10, 512, %s418, [#allocation12], 128, 128, 8
        $region40: #{multi_headed_attention.1} parent=11 // pred_fallthru
          _
        // Predicated region
        $region41: #{multi_headed_attention.1} parent=11 // pred_check
          %p424 = pneg %p306
        $region42: #{multi_headed_attention.1} parent=11 // pred_check_branch
          %426 = sbr.rel (%p424) target = $region44
        $region43: #{multi_headed_attention.1} parent=11 // pred_region
          _
        $region44: #{multi_headed_attention.1} parent=11 // pred_fallthru
          _
      $region12: #{multi_headed_attention.1} parent=5 // pred_fallthru
        _
      %p427 = scmp.lt.s32.totalorder %s34, 2
      // Predicated region
      $region45: #{multi_headed_attention.1} parent=5 // pred_check
        %p428 = pneg %p427
      $region46: #{multi_headed_attention.1} parent=5 // pred_check_branch
        %430 = sbr.rel (%p428) target = $region48
      $region47: #{multi_headed_attention.1} parent=5 // pred_region
        // Predicated region
        $region49: #{multi_headed_attention.1} parent=47 // pred_check
          %p431 = pneg %p54
        $region50: #{multi_headed_attention.1} parent=47 // pred_check_branch
          %433 = sbr.rel (%p431) target = $region52
        $region51: #{multi_headed_attention.1} parent=47 // pred_region
          %s434 = sand.u32 %s44, 1
          %s435 = scalar_lea.sflag [#allocation3], %s434
          %s436 = sand.u32 %s44, 1
          %s437 = smul.addr %s436, 8
          %s438 = scalar_lea.vmem [#allocation2], %s437
          %s440 = ssub.s32 128, 128
          %441 = vsyncadd %s435, %s440
          %s442 = smul.addr %s34, 128
          %s443 = scalar_lea.hbm %s0, %s442
          %s445 = sshll.u32 %s438, 4
          %s446 = int_to_ptr.vmem [resolvable:$true] %s445
          %448 = dma.hbm_to_vmem [thread:$0]  %s443, 128, %s446, %s435
        $region52: #{multi_headed_attention.1} parent=47 // pred_fallthru
          _
        // Predicated region
        $region53: #{multi_headed_attention.1} parent=47 // pred_check
          %p449 = pneg %p80
        $region54: #{multi_headed_attention.1} parent=47 // pred_check_branch
          %451 = sbr.rel (%p449) target = $region56
        $region55: #{multi_headed_attention.1} parent=47 // pred_region
          %s452 = sand.u32 %s34, 1
          %s453 = scalar_lea.sflag [#allocation6], %s452
          %s454 = sand.u32 %s70, 1
          %s455 = smul.addr %s454, 8
          %s456 = scalar_lea.vmem [#allocation5], %s455
          %s458 = ssub.s32 128, 128
          %459 = vsyncadd %s453, %s458
          %s460 = smul.addr %s34, 128
          %s461 = scalar_lea.hbm %s1, %s460
          %s463 = sshll.u32 %s456, 4
          %s464 = int_to_ptr.vmem [resolvable:$true] %s463
          %466 = dma.hbm_to_vmem [thread:$0]  %s461, 128, %s464, %s453
        $region56: #{multi_headed_attention.1} parent=47 // pred_fallthru
          _
        // Predicated region
        $region57: #{multi_headed_attention.1} parent=47 // pred_check
          %p467 = pneg %p106
        $region58: #{multi_headed_attention.1} parent=47 // pred_check_branch
          %469 = sbr.rel (%p467) target = $region60
        $region59: #{multi_headed_attention.1} parent=47 // pred_region
          %s470 = sand.u32 %s34, 1
          %s471 = scalar_lea.sflag [#allocation6], %s470
          %s472 = sand.u32 %s96, 1
          %s473 = smul.addr %s472, 8
          %s474 = scalar_lea.vmem [#allocation7], %s473
          %s476 = ssub.s32 128, 128
          %477 = vsyncadd %s471, %s476
          %s478 = smul.addr %s34, 128
          %s479 = scalar_lea.hbm %s2, %s478
          %s481 = sshll.u32 %s474, 4
          %s482 = int_to_ptr.vmem [resolvable:$true] %s481
          %484 = dma.hbm_to_vmem [thread:$0]  %s479, 128, %s482, %s471
        $region60: #{multi_headed_attention.1} parent=47 // pred_fallthru
          _
        // Predicated region
        $region61: #{multi_headed_attention.1} parent=47 // pred_check
          %p485 = pneg %p132
        $region62: #{multi_headed_attention.1} parent=47 // pred_check_branch
          %487 = sbr.rel (%p485) target = $region64
        $region63: #{multi_headed_attention.1} parent=47 // pred_region
          %p488 = scmp.lt.s32.totalorder %s34, 1
          %s489 = scalar_select %p488, %s34, 1
          %s490 = scalar_lea.vmem %s3, %s489
        $region64: #{multi_headed_attention.1} parent=47 // pred_fallthru
          _
      $region48: #{multi_headed_attention.1} parent=5 // pred_fallthru
        _
      %p491 = scmp.le.s32.totalorder 1, %s34
      %p492 = scmp.lt.s32.totalorder %s34, 3
      %p493 = pnand %p491, %p492
      %p494 = pneg %p493
      // Predicated region
      $region65: #{multi_headed_attention.1} parent=5 // pred_check
        _
      $region66: #{multi_headed_attention.1} parent=5 // pred_check_branch
        %496 = sbr.rel (%p493) target = $region68
      $region67: #{multi_headed_attention.1} parent=5 // pred_region
        %s497 = ssub.s32 %s34, 1
        %s498 = sand.u32 %s47, 1
        %s499 = scalar_lea.sflag [#allocation3], %s498
        %s500 = sand.u32 %s47, 1
        %s501 = smul.addr %s500, 8
        %s502 = scalar_lea.vmem [#allocation2], %s501
        // Predicated region
        $region69: #{multi_headed_attention.1} parent=67 // pred_check
          %p503 = pneg %p60
        $region70: #{multi_headed_attention.1} parent=67 // pred_check_branch
          %505 = sbr.rel (%p503) target = $region72
        $region71: #{multi_headed_attention.1} parent=67 // pred_region
          %506 = dma.done %s499, 128
        $region72: #{multi_headed_attention.1} parent=67 // pred_fallthru
          _
        %s507 = sand.u32 %s39, 1
        %s508 = scalar_lea.sflag [#allocation6], %s507
        %s509 = sand.u32 %s73, 1
        %s510 = smul.addr %s509, 8
        %s511 = scalar_lea.vmem [#allocation5], %s510
        // Predicated region
        $region73: #{multi_headed_attention.1} parent=67 // pred_check
          %p512 = pneg %p86
        $region74: #{multi_headed_attention.1} parent=67 // pred_check_branch
          %514 = sbr.rel (%p512) target = $region76
        $region75: #{multi_headed_attention.1} parent=67 // pred_region
          %515 = dma.done %s508, 128
        $region76: #{multi_headed_attention.1} parent=67 // pred_fallthru
          _
        %s516 = sand.u32 %s39, 1
        %s517 = scalar_lea.sflag [#allocation6], %s516
        %s518 = sand.u32 %s99, 1
        %s519 = smul.addr %s518, 8
        %s520 = scalar_lea.vmem [#allocation7], %s519
        // Predicated region
        $region77: #{multi_headed_attention.1} parent=67 // pred_check
          %p521 = pneg %p112
        $region78: #{multi_headed_attention.1} parent=67 // pred_check_branch
          %523 = sbr.rel (%p521) target = $region80
        $region79: #{multi_headed_attention.1} parent=67 // pred_region
          %524 = dma.done %s517, 128
        $region80: #{multi_headed_attention.1} parent=67 // pred_fallthru
          _
        // Predicated region
        $region81: #{multi_headed_attention.1} parent=67 // pred_check
          %p525 = pneg %p201
        $region82: #{multi_headed_attention.1} parent=67 // pred_check_branch
          %527 = sbr.rel (%p525) target = $region84
        $region83: #{multi_headed_attention.1} parent=67 // pred_region
          %528 = dma.done [#allocation9], 512
        $region84: #{multi_headed_attention.1} parent=67 // pred_fallthru
          _
        // Predicated region
        $region85: #{multi_headed_attention.1} parent=67 // pred_check
          %p529 = pneg %p243
        $region86: #{multi_headed_attention.1} parent=67 // pred_check_branch
          %531 = sbr.rel (%p529) target = $region88
        $region87: #{multi_headed_attention.1} parent=67 // pred_region
          %532 = dma.done [#allocation9], 512
        $region88: #{multi_headed_attention.1} parent=67 // pred_fallthru
          _
        // Predicated region
        $region89: #{multi_headed_attention.1} parent=67 // pred_check
          %p533 = pneg %p285
        $region90: #{multi_headed_attention.1} parent=67 // pred_check_branch
          %535 = sbr.rel (%p533) target = $region92
        $region91: #{multi_headed_attention.1} parent=67 // pred_region
          %536 = dma.done [#allocation12], 512
        $region92: #{multi_headed_attention.1} parent=67 // pred_fallthru
          _
        %s537 = sand.u32 %s47, 1
        %s538 = scalar_lea.sflag [#allocation3], %s537
        %s539 = sand.u32 %s47, 1
        %s540 = smul.addr %s539, 8
        %s541 = scalar_lea.vmem [#allocation2], %s540
        %p542 = pneg %p60
        %p543 = pneg %p57
        %s544 = sand.u32 %s39, 1
        %s545 = scalar_lea.sflag [#allocation6], %s544
        %s546 = sand.u32 %s73, 1
        %s547 = smul.addr %s546, 8
        %s548 = scalar_lea.vmem [#allocation5], %s547
        %p549 = pneg %p86
        %p550 = pneg %p83
        %s551 = sand.u32 %s39, 1
        %s552 = scalar_lea.sflag [#allocation6], %s551
        %s553 = sand.u32 %s99, 1
        %s554 = smul.addr %s553, 8
        %s555 = scalar_lea.vmem [#allocation7], %s554
        %p556 = pneg %p112
        %p557 = pneg %p109
        %p558 = scmp.lt.s32.totalorder %s39, 1
        %s559 = scalar_select %p558, %s39, 1
        %s560 = scalar_lea.vmem %s3, %s559
        %p561 = pneg %p138
        %p562 = pneg %p135
        %p563 = pneg %p159
        %p564 = pneg %p156
        %p565 = pneg %p180
        %p566 = pneg %p177
        %p567 = pneg %p201
        %p568 = pneg %p198
        %p569 = pneg %p222
        %p570 = pneg %p219
        %p571 = pneg %p243
        %p572 = pneg %p240
        %p573 = pneg %p264
        %p574 = pneg %p261
        %p575 = pneg %p285
        %p576 = pneg %p282
        %p577 = pneg %p306
        %p578 = pneg %p303
        %p579 = pneg %p332
        %p580 = pneg %p329
        %s581 = sand.u32 %s319, 1
        %s582 = scalar_lea.sflag [#allocation4], %s581
        %s583 = sand.u32 %s319, 1
        %s584 = smul.addr %s583, 8
        %s585 = scalar_lea.vmem [#allocation13], %s584
        %p586 = pneg %p358
        %p587 = pneg %p355
        %s588 = sand.u32 %s345, 1
        %s589 = scalar_lea.sflag [#allocation15], %s588
        %s590 = sand.u32 %s345, 1
        %s591 = smul.addr %s590, 32
        %s592 = scalar_lea.vmem [#allocation14], %s591
        %p593 = scmp.lt.s32.totalorder %s39, 1
        %s594 = scalar_select %p593, %s39, 1
        %s595 = scalar_lea.vmem %s3, %s594
        %v596 = vld [vmem:[%s502] sm:$0xff]
        %v597 = vld [vmem:[%s511] sm:$0xff]
        %v598 = vld [vmem:[%s520] sm:$0xff]
        %v599 = vld [vmem:[%s595] sm:$0x1]
        %v600 = vld [vmem:[%s4] sm:$0xff]
        %v601 = vld [vmem:[%s4 + $0x8] sm:$0xff]
        %v602 = vld [vmem:[%s4 + $0x10] sm:$0xff]
        %v603 = vld [vmem:[%s4 + $0x18] sm:$0xff]
        %v604 = vld [vmem:[%s5] sm:$0x1]
        %v606 = vlaneseq
        %v607 = vshrl.u32 %v606, 7
        %v608 = vsub.s32 0, %v607
        %v609 = vrot.slane %v604, %v608
        %vm611 = vcmask 261120
        %v613 = vsel %vm611, %v596, 0
        %615 = vmatprep.subr.mxu0 0.0
        %616 = vmatpush1.msra.mxu0 %v600
        %617 = vmatprep.subr.mxu0 0.0
        %618 = vmatpush1.msra.mxu0 %v601
        %619 = vmatprep.subr.mxu0 0.0
        %620 = vmatpush1.msra.mxu0 %v602
        %621 = vmatprep.subr.mxu0 0.0
        %622 = vmatpush1.msra.mxu0 %v603
        %623 = vmatprep.subr.mxu0 0.0
        %624 = vmatpush1.msra.mxu0 0.0
        %625 = vmatprep.subr.mxu0 0.0
        %626 = vmatpush1.msra.mxu0 0.0
        %627 = vmatprep.subr.mxu0 0.0
        %628 = vmatpush1.msra.mxu0 0.0
        %629 = vmatprep.subr.mxu0 0.0
        %630 = vmatpush1.msra.mxu0 0.0
        %631 = vmatprep.subr.mxu0 0.0
        %632 = vmatpush1.msra.mxu0 0.0
        %633 = vmatprep.subr.mxu0 0.0
        %634 = vmatpush1.msra.mxu0 0.0
        %635 = vmatprep.subr.mxu0 0.0
        %636 = vmatpush1.msra.mxu0 0.0
        %637 = vmatprep.subr.mxu0 0.0
        %638 = vmatpush1.msra.mxu0 0.0
        %639 = vmatprep.subr.mxu0 0.0
        %640 = vmatpush1.msra.mxu0 0.0
        %641 = vmatprep.subr.mxu0 0.0
        %642 = vmatpush1.msra.mxu0 0.0
        %643 = vmatprep.subr.mxu0 0.0
        %644 = vmatpush1.msra.mxu0 0.0
        %645 = vmatprep.subr.mxu0 0.0
        %646 = vmatpush1.msra.mxu0 0.0
        %647 = vmatprep.subr.mxu0 0.0
        %648 = vmatpush1.msra.mxu0 0.0
        %649 = vmatprep.subr.mxu0 0.0
        %650 = vmatpush1.msra.mxu0 0.0
        %651 = vmatprep.subr.mxu0 0.0
        %652 = vmatpush1.msra.mxu0 0.0
        %653 = vmatprep.subr.mxu0 0.0
        %654 = vmatpush1.msra.mxu0 0.0
        %655 = vmatprep.subr.mxu0 0.0
        %656 = vmatpush1.msra.mxu0 0.0
        %657 = vmatprep.subr.mxu0 0.0
        %658 = vmatpush1.msra.mxu0 0.0
        %659 = vmatprep.subr.mxu0 0.0
        %660 = vmatpush1.msra.mxu0 0.0
        %661 = vmatprep.subr.mxu0 0.0
        %662 = vmatpush1.msra.mxu0 0.0
        %663 = vmatprep.subr.mxu0 0.0
        %664 = vmatpush1.msra.mxu0 0.0
        %665 = vmatprep.subr.mxu0 0.0
        %666 = vmatpush1.msra.mxu0 0.0
        %667 = vmatprep.subr.mxu0 0.0
        %668 = vmatpush1.msra.mxu0 0.0
        %669 = vmatprep.subr.mxu0 0.0
        %670 = vmatpush1.msra.mxu0 0.0
        %671 = vmatprep.subr.mxu0 0.0
        %672 = vmatpush1.msra.mxu0 0.0
        %673 = vmatprep.subr.mxu0 0.0
        %674 = vmatpush1.msra.mxu0 0.0
        %675 = vmatprep.subr.mxu0 0.0
        %676 = vmatpush1.msra.mxu0 0.0
        %677 = vmatprep.subr.mxu0 0.0
        %678 = vmatpush1.msra.mxu0 0.0
        %679 = vmatprep.mubr.f32.mxu0 0.0
        %680 = vmatmul.mubr.f32.gmra.mrb[0].mxu0 %v613
        %v681 = vpop.f32.mrb[0].mxu0
        %v682 = vadd.f32 %v609, %v681
        %v683 = vpop.f32.mrb[0].mxu0
        %684 = vdwg.mxu0
        %v685 = vld [vmem:[#allocation8] sm:$0xff]
        %v686 = vld [vmem:[#allocation8 + $0x8] sm:$0xff]
        %v687 = vld [vmem:[#allocation8 + $0x10] sm:$0xff]
        %v688 = vld [vmem:[#allocation8 + $0x18] sm:$0xff]
        %v689 = vld [vmem:[%s7] sm:$0x1]
        %v691 = vlaneseq
        %v692 = vshrl.u32 %v691, 7
        %v693 = vsub.s32 0, %v692
        %v694 = vrot.slane %v689, %v693
        %v697 = vsel %vm611, %v597, 0
        %699 = vmatprep.subr.mxu0 0.0
        %700 = vmatpush1.msra.mxu0 %v685
        %701 = vmatprep.subr.mxu0 0.0
        %702 = vmatpush1.msra.mxu0 %v686
        %703 = vmatprep.subr.mxu0 0.0
        %704 = vmatpush1.msra.mxu0 %v687
        %705 = vmatprep.subr.mxu0 0.0
        %706 = vmatpush1.msra.mxu0 %v688
        %707 = vmatprep.subr.mxu0 0.0
        %708 = vmatpush1.msra.mxu0 0.0
        %709 = vmatprep.subr.mxu0 0.0
        %710 = vmatpush1.msra.mxu0 0.0
        %711 = vmatprep.subr.mxu0 0.0
        %712 = vmatpush1.msra.mxu0 0.0
        %713 = vmatprep.subr.mxu0 0.0
        %714 = vmatpush1.msra.mxu0 0.0
        %715 = vmatprep.subr.mxu0 0.0
        %716 = vmatpush1.msra.mxu0 0.0
        %717 = vmatprep.subr.mxu0 0.0
        %718 = vmatpush1.msra.mxu0 0.0
        %719 = vmatprep.subr.mxu0 0.0
        %720 = vmatpush1.msra.mxu0 0.0
        %721 = vmatprep.subr.mxu0 0.0
        %722 = vmatpush1.msra.mxu0 0.0
        %723 = vmatprep.subr.mxu0 0.0
        %724 = vmatpush1.msra.mxu0 0.0
        %725 = vmatprep.subr.mxu0 0.0
        %726 = vmatpush1.msra.mxu0 0.0
        %727 = vmatprep.subr.mxu0 0.0
        %728 = vmatpush1.msra.mxu0 0.0
        %729 = vmatprep.subr.mxu0 0.0
        %730 = vmatpush1.msra.mxu0 0.0
        %731 = vmatprep.subr.mxu0 0.0
        %732 = vmatpush1.msra.mxu0 0.0
        %733 = vmatprep.subr.mxu0 0.0
        %734 = vmatpush1.msra.mxu0 0.0
        %735 = vmatprep.subr.mxu0 0.0
        %736 = vmatpush1.msra.mxu0 0.0
        %737 = vmatprep.subr.mxu0 0.0
        %738 = vmatpush1.msra.mxu0 0.0
        %739 = vmatprep.subr.mxu0 0.0
        %740 = vmatpush1.msra.mxu0 0.0
        %741 = vmatprep.subr.mxu0 0.0
        %742 = vmatpush1.msra.mxu0 0.0
        %743 = vmatprep.subr.mxu0 0.0
        %744 = vmatpush1.msra.mxu0 0.0
        %745 = vmatprep.subr.mxu0 0.0
        %746 = vmatpush1.msra.mxu0 0.0
        %747 = vmatprep.subr.mxu0 0.0
        %748 = vmatpush1.msra.mxu0 0.0
        %749 = vmatprep.subr.mxu0 0.0
        %750 = vmatpush1.msra.mxu0 0.0
        %751 = vmatprep.subr.mxu0 0.0
        %752 = vmatpush1.msra.mxu0 0.0
        %753 = vmatprep.subr.mxu0 0.0
        %754 = vmatpush1.msra.mxu0 0.0
        %755 = vmatprep.subr.mxu0 0.0
        %756 = vmatpush1.msra.mxu0 0.0
        %757 = vmatprep.subr.mxu0 0.0
        %758 = vmatpush1.msra.mxu0 0.0
        %759 = vmatprep.subr.mxu0 0.0
        %760 = vmatpush1.msra.mxu0 0.0
        %761 = vmatprep.subr.mxu0 0.0
        %762 = vmatpush1.msra.mxu0 0.0
        %763 = vmatprep.mubr.f32.mxu0 0.0
        %764 = vmatmul.mubr.f32.gmra.mrb[0].mxu0 %v697
        %v765 = vpop.f32.mrb[0].mxu0
        %v766 = vadd.f32 %v694, %v765
        %v767 = vpop.f32.mrb[0].mxu0
        %768 = vdwg.mxu0
        %v769 = vld [vmem:[#allocation10] sm:$0xff]
        %v770 = vld [vmem:[#allocation10 + $0x8] sm:$0xff]
        %v771 = vld [vmem:[#allocation10 + $0x10] sm:$0xff]
        %v772 = vld [vmem:[#allocation10 + $0x18] sm:$0xff]
        %v773 = vld [vmem:[%s9] sm:$0x1]
        %v775 = vlaneseq
        %v776 = vshrl.u32 %v775, 7
        %v777 = vsub.s32 0, %v776
        %v778 = vrot.slane %v773, %v777
        %v781 = vsel %vm611, %v598, 0
        %783 = vmatprep.subr.mxu0 0.0
        %784 = vmatpush1.msra.mxu0 %v769
        %785 = vmatprep.subr.mxu0 0.0
        %786 = vmatpush1.msra.mxu0 %v770
        %787 = vmatprep.subr.mxu0 0.0
        %788 = vmatpush1.msra.mxu0 %v771
        %789 = vmatprep.subr.mxu0 0.0
        %790 = vmatpush1.msra.mxu0 %v772
        %791 = vmatprep.subr.mxu0 0.0
        %792 = vmatpush1.msra.mxu0 0.0
        %793 = vmatprep.subr.mxu0 0.0
        %794 = vmatpush1.msra.mxu0 0.0
        %795 = vmatprep.subr.mxu0 0.0
        %796 = vmatpush1.msra.mxu0 0.0
        %797 = vmatprep.subr.mxu0 0.0
        %798 = vmatpush1.msra.mxu0 0.0
        %799 = vmatprep.subr.mxu0 0.0
        %800 = vmatpush1.msra.mxu0 0.0
        %801 = vmatprep.subr.mxu0 0.0
        %802 = vmatpush1.msra.mxu0 0.0
        %803 = vmatprep.subr.mxu0 0.0
        %804 = vmatpush1.msra.mxu0 0.0
        %805 = vmatprep.subr.mxu0 0.0
        %806 = vmatpush1.msra.mxu0 0.0
        %807 = vmatprep.subr.mxu0 0.0
        %808 = vmatpush1.msra.mxu0 0.0
        %809 = vmatprep.subr.mxu0 0.0
        %810 = vmatpush1.msra.mxu0 0.0
        %811 = vmatprep.subr.mxu0 0.0
        %812 = vmatpush1.msra.mxu0 0.0
        %813 = vmatprep.subr.mxu0 0.0
        %814 = vmatpush1.msra.mxu0 0.0
        %815 = vmatprep.subr.mxu0 0.0
        %816 = vmatpush1.msra.mxu0 0.0
        %817 = vmatprep.subr.mxu0 0.0
        %818 = vmatpush1.msra.mxu0 0.0
        %819 = vmatprep.subr.mxu0 0.0
        %820 = vmatpush1.msra.mxu0 0.0
        %821 = vmatprep.subr.mxu0 0.0
        %822 = vmatpush1.msra.mxu0 0.0
        %823 = vmatprep.subr.mxu0 0.0
        %824 = vmatpush1.msra.mxu0 0.0
        %825 = vmatprep.subr.mxu0 0.0
        %826 = vmatpush1.msra.mxu0 0.0
        %827 = vmatprep.subr.mxu0 0.0
        %828 = vmatpush1.msra.mxu0 0.0
        %829 = vmatprep.subr.mxu0 0.0
        %830 = vmatpush1.msra.mxu0 0.0
        %831 = vmatprep.subr.mxu0 0.0
        %832 = vmatpush1.msra.mxu0 0.0
        %833 = vmatprep.subr.mxu0 0.0
        %834 = vmatpush1.msra.mxu0 0.0
        %835 = vmatprep.subr.mxu0 0.0
        %836 = vmatpush1.msra.mxu0 0.0
        %837 = vmatprep.subr.mxu0 0.0
        %838 = vmatpush1.msra.mxu0 0.0
        %839 = vmatprep.subr.mxu0 0.0
        %840 = vmatpush1.msra.mxu0 0.0
        %841 = vmatprep.subr.mxu0 0.0
        %842 = vmatpush1.msra.mxu0 0.0
        %843 = vmatprep.subr.mxu0 0.0
        %844 = vmatpush1.msra.mxu0 0.0
        %845 = vmatprep.subr.mxu0 0.0
        %846 = vmatpush1.msra.mxu0 0.0
        %847 = vmatprep.mubr.f32.mxu0 0.0
        %848 = vmatmul.mubr.f32.gmra.mrb[0].mxu0 %v781
        %v849 = vpop.f32.mrb[0].mxu0
        %v850 = vadd.f32 %v778, %v849
        %v851 = vpop.f32.mrb[0].mxu0
        %852 = vdwg.mxu0
        %v853 = vmul.f32 %v682, 0.35355338
        %vm854 = vcmask 64512
        %v856 = vsel %vm854, %v853, 0
        %v859 = vsel %vm854, %v766, 0
        %861 = vmatprep.subr.mxu0 0.0
        %862 = vmatpush1.xpose.msra.mxu0 %v859
        %863 = vmatprep.subr.mxu0 0.0
        %864 = vmatpush1.xpose.msra.mxu0 0.0
        %865 = vmatprep.subr.mxu0 0.0
        %866 = vmatpush1.xpose.msra.mxu0 0.0
        %867 = vmatprep.subr.mxu0 0.0
        %868 = vmatpush1.xpose.msra.mxu0 0.0
        %869 = vmatprep.subr.mxu0 0.0
        %870 = vmatpush1.xpose.msra.mxu0 0.0
        %871 = vmatprep.subr.mxu0 0.0
        %872 = vmatpush1.xpose.msra.mxu0 0.0
        %873 = vmatprep.subr.mxu0 0.0
        %874 = vmatpush1.xpose.msra.mxu0 0.0
        %875 = vmatprep.subr.mxu0 0.0
        %876 = vmatpush1.xpose.msra.mxu0 0.0
        %877 = vmatprep.subr.mxu0 0.0
        %878 = vmatpush1.xpose.msra.mxu0 0.0
        %879 = vmatprep.subr.mxu0 0.0
        %880 = vmatpush1.xpose.msra.mxu0 0.0
        %881 = vmatprep.subr.mxu0 0.0
        %882 = vmatpush1.xpose.msra.mxu0 0.0
        %883 = vmatprep.subr.mxu0 0.0
        %884 = vmatpush1.xpose.msra.mxu0 0.0
        %885 = vmatprep.subr.mxu0 0.0
        %886 = vmatpush1.xpose.msra.mxu0 0.0
        %887 = vmatprep.subr.mxu0 0.0
        %888 = vmatpush1.xpose.msra.mxu0 0.0
        %889 = vmatprep.subr.mxu0 0.0
        %890 = vmatpush1.xpose.msra.mxu0 0.0
        %891 = vmatprep.subr.mxu0 0.0
        %892 = vmatpush1.xpose.msra.mxu0 0.0
        %893 = vmatprep.subr.mxu0 0.0
        %894 = vmatpush1.xpose.msra.mxu0 0.0
        %895 = vmatprep.subr.mxu0 0.0
        %896 = vmatpush1.xpose.msra.mxu0 0.0
        %897 = vmatprep.subr.mxu0 0.0
        %898 = vmatpush1.xpose.msra.mxu0 0.0
        %899 = vmatprep.subr.mxu0 0.0
        %900 = vmatpush1.xpose.msra.mxu0 0.0
        %901 = vmatprep.subr.mxu0 0.0
        %902 = vmatpush1.xpose.msra.mxu0 0.0
        %903 = vmatprep.subr.mxu0 0.0
        %904 = vmatpush1.xpose.msra.mxu0 0.0
        %905 = vmatprep.subr.mxu0 0.0
        %906 = vmatpush1.xpose.msra.mxu0 0.0
        %907 = vmatprep.subr.mxu0 0.0
        %908 = vmatpush1.xpose.msra.mxu0 0.0
        %909 = vmatprep.subr.mxu0 0.0
        %910 = vmatpush1.xpose.msra.mxu0 0.0
        %911 = vmatprep.subr.mxu0 0.0
        %912 = vmatpush1.xpose.msra.mxu0 0.0
        %913 = vmatprep.subr.mxu0 0.0
        %914 = vmatpush1.xpose.msra.mxu0 0.0
        %915 = vmatprep.subr.mxu0 0.0
        %916 = vmatpush1.xpose.msra.mxu0 0.0
        %917 = vmatprep.subr.mxu0 0.0
        %918 = vmatpush1.xpose.msra.mxu0 0.0
        %919 = vmatprep.subr.mxu0 0.0
        %920 = vmatpush1.xpose.msra.mxu0 0.0
        %921 = vmatprep.subr.mxu0 0.0
        %922 = vmatpush1.xpose.msra.mxu0 0.0
        %923 = vmatprep.subr.mxu0 0.0
        %924 = vmatpush1.xpose.msra.mxu0 0.0
        %925 = vmatprep.mubr.f32.mxu0 0.0
        %926 = vmatmul.mubr.f32.gmra.mrb[0].mxu0 %v856
        %v927 = vpop.f32.mrb[0].mxu0
        %v928 = vadd.f32 0.0, %v927
        %v929 = vpop.f32.mrb[0].mxu0
        %930 = vdwg.mxu0
        %vm931 = vcmp.eq.f32.partialorder %v599, 0.0
        %v932 = vsel %vm931, 1, 0
        %v933 = vlaneseq
        %v934 = vshrl.u32 %v933, 7
        %v935 = vsub.s32 0, %v934
        %v936 = vrot.slane %v932, %v935
        %vm937 = vcmp.eq.s32.totalorder %v936, 1
        %v938 = vsel %vm937, -1e+09, %v928
        %v939 = vsel %vm854, %v938, -inf
        %940 = vmax.xlane.f32.xlu0 %v939
        %v941 = vpop.xlane.xlu0 %940
        %v942 = vsub.f32 %v938, %v941
        %v943 = vmul.f32 %v942, 1.442695
        %v944 = vpow.pop %v943
        %v945 = vsel %vm854, %v944, 0.0
        %946 = vadd.xlane.f32.xlu0 %v945
        %v947 = vpop.xlane.xlu0 %946
        %v948 = vrcp.pop %v947
        %v949 = vmul.f32 %v944, %v948
        %950 = vst.msk [vmem:[%s592] sm:$0xff] %vm854, %v949
        %v952 = vsel %vm854, %v949, 0
        %954 = vmatprep.subr.mxu0 0.0
        %955 = vmatpush1.msra.mxu0 %v850
        %956 = vmatprep.subr.mxu0 0.0
        %957 = vmatpush1.msra.mxu0 0.0
        %958 = vmatprep.subr.mxu0 0.0
        %959 = vmatpush1.msra.mxu0 0.0
        %960 = vmatprep.subr.mxu0 0.0
        %961 = vmatpush1.msra.mxu0 0.0
        %962 = vmatprep.subr.mxu0 0.0
        %963 = vmatpush1.msra.mxu0 0.0
        %964 = vmatprep.subr.mxu0 0.0
        %965 = vmatpush1.msra.mxu0 0.0
        %966 = vmatprep.subr.mxu0 0.0
        %967 = vmatpush1.msra.mxu0 0.0
        %968 = vmatprep.subr.mxu0 0.0
        %969 = vmatpush1.msra.mxu0 0.0
        %970 = vmatprep.subr.mxu0 0.0
        %971 = vmatpush1.msra.mxu0 0.0
        %972 = vmatprep.subr.mxu0 0.0
        %973 = vmatpush1.msra.mxu0 0.0
        %974 = vmatprep.subr.mxu0 0.0
        %975 = vmatpush1.msra.mxu0 0.0
        %976 = vmatprep.subr.mxu0 0.0
        %977 = vmatpush1.msra.mxu0 0.0
        %978 = vmatprep.subr.mxu0 0.0
        %979 = vmatpush1.msra.mxu0 0.0
        %980 = vmatprep.subr.mxu0 0.0
        %981 = vmatpush1.msra.mxu0 0.0
        %982 = vmatprep.subr.mxu0 0.0
        %983 = vmatpush1.msra.mxu0 0.0
        %984 = vmatprep.subr.mxu0 0.0
        %985 = vmatpush1.msra.mxu0 0.0
        %986 = vmatprep.subr.mxu0 0.0
        %987 = vmatpush1.msra.mxu0 0.0
        %988 = vmatprep.subr.mxu0 0.0
        %989 = vmatpush1.msra.mxu0 0.0
        %990 = vmatprep.subr.mxu0 0.0
        %991 = vmatpush1.msra.mxu0 0.0
        %992 = vmatprep.subr.mxu0 0.0
        %993 = vmatpush1.msra.mxu0 0.0
        %994 = vmatprep.subr.mxu0 0.0
        %995 = vmatpush1.msra.mxu0 0.0
        %996 = vmatprep.subr.mxu0 0.0
        %997 = vmatpush1.msra.mxu0 0.0
        %998 = vmatprep.subr.mxu0 0.0
        %999 = vmatpush1.msra.mxu0 0.0
        %1000 = vmatprep.subr.mxu0 0.0
        %1001 = vmatpush1.msra.mxu0 0.0
        %1002 = vmatprep.subr.mxu0 0.0
        %1003 = vmatpush1.msra.mxu0 0.0
        %1004 = vmatprep.subr.mxu0 0.0
        %1005 = vmatpush1.msra.mxu0 0.0
        %1006 = vmatprep.subr.mxu0 0.0
        %1007 = vmatpush1.msra.mxu0 0.0
        %1008 = vmatprep.subr.mxu0 0.0
        %1009 = vmatpush1.msra.mxu0 0.0
        %1010 = vmatprep.subr.mxu0 0.0
        %1011 = vmatpush1.msra.mxu0 0.0
        %1012 = vmatprep.subr.mxu0 0.0
        %1013 = vmatpush1.msra.mxu0 0.0
        %1014 = vmatprep.subr.mxu0 0.0
        %1015 = vmatpush1.msra.mxu0 0.0
        %1016 = vmatprep.subr.mxu0 0.0
        %1017 = vmatpush1.msra.mxu0 0.0
        %1018 = vmatprep.mubr.f32.mxu0 0.0
        %1019 = vmatmul.mubr.f32.gmra.mrb[0].mxu0 %v952
        %v1020 = vpop.f32.mrb[0].mxu0
        %v1021 = vadd.f32 0.0, %v1020
        %v1022 = vpop.f32.mrb[0].mxu0
        %1023 = vdwg.mxu0
        %1024 = vrot.lane.b32.xlu0 %v853, 120
        %v1025 = vpop.permute.xlu0 %1024
        %1026 = vrot.lane.b32.xlu0 %v766, 120
        %v1027 = vpop.permute.xlu0 %1026
        %v1028 = vsel %vm854, %v1025, 0
        %v1030 = vsel %vm854, %v1027, 0
        %1032 = vmatprep.subr.mxu0 0.0
        %1033 = vmatpush1.xpose.msra.mxu0 %v1030
        %1034 = vmatprep.subr.mxu0 0.0
        %1035 = vmatpush1.xpose.msra.mxu0 0.0
        %1036 = vmatprep.subr.mxu0 0.0
        %1037 = vmatpush1.xpose.msra.mxu0 0.0
        %1038 = vmatprep.subr.mxu0 0.0
        %1039 = vmatpush1.xpose.msra.mxu0 0.0
        %1040 = vmatprep.subr.mxu0 0.0
        %1041 = vmatpush1.xpose.msra.mxu0 0.0
        %1042 = vmatprep.subr.mxu0 0.0
        %1043 = vmatpush1.xpose.msra.mxu0 0.0
        %1044 = vmatprep.subr.mxu0 0.0
        %1045 = vmatpush1.xpose.msra.mxu0 0.0
        %1046 = vmatprep.subr.mxu0 0.0
        %1047 = vmatpush1.xpose.msra.mxu0 0.0
        %1048 = vmatprep.subr.mxu0 0.0
        %1049 = vmatpush1.xpose.msra.mxu0 0.0
        %1050 = vmatprep.subr.mxu0 0.0
        %1051 = vmatpush1.xpose.msra.mxu0 0.0
        %1052 = vmatprep.subr.mxu0 0.0
        %1053 = vmatpush1.xpose.msra.mxu0 0.0
        %1054 = vmatprep.subr.mxu0 0.0
        %1055 = vmatpush1.xpose.msra.mxu0 0.0
        %1056 = vmatprep.subr.mxu0 0.0
        %1057 = vmatpush1.xpose.msra.mxu0 0.0
        %1058 = vmatprep.subr.mxu0 0.0
        %1059 = vmatpush1.xpose.msra.mxu0 0.0
        %1060 = vmatprep.subr.mxu0 0.0
        %1061 = vmatpush1.xpose.msra.mxu0 0.0
        %1062 = vmatprep.subr.mxu0 0.0
        %1063 = vmatpush1.xpose.msra.mxu0 0.0
        %1064 = vmatprep.subr.mxu0 0.0
        %1065 = vmatpush1.xpose.msra.mxu0 0.0
        %1066 = vmatprep.subr.mxu0 0.0
        %1067 = vmatpush1.xpose.msra.mxu0 0.0
        %1068 = vmatprep.subr.mxu0 0.0
        %1069 = vmatpush1.xpose.msra.mxu0 0.0
        %1070 = vmatprep.subr.mxu0 0.0
        %1071 = vmatpush1.xpose.msra.mxu0 0.0
        %1072 = vmatprep.subr.mxu0 0.0
        %1073 = vmatpush1.xpose.msra.mxu0 0.0
        %1074 = vmatprep.subr.mxu0 0.0
        %1075 = vmatpush1.xpose.msra.mxu0 0.0
        %1076 = vmatprep.subr.mxu0 0.0
        %1077 = vmatpush1.xpose.msra.mxu0 0.0
        %1078 = vmatprep.subr.mxu0 0.0
        %1079 = vmatpush1.xpose.msra.mxu0 0.0
        %1080 = vmatprep.subr.mxu0 0.0
        %1081 = vmatpush1.xpose.msra.mxu0 0.0
        %1082 = vmatprep.subr.mxu0 0.0
        %1083 = vmatpush1.xpose.msra.mxu0 0.0
        %1084 = vmatprep.subr.mxu0 0.0
        %1085 = vmatpush1.xpose.msra.mxu0 0.0
        %1086 = vmatprep.subr.mxu0 0.0
        %1087 = vmatpush1.xpose.msra.mxu0 0.0
        %1088 = vmatprep.subr.mxu0 0.0
        %1089 = vmatpush1.xpose.msra.mxu0 0.0
        %1090 = vmatprep.subr.mxu0 0.0
        %1091 = vmatpush1.xpose.msra.mxu0 0.0
        %1092 = vmatprep.subr.mxu0 0.0
        %1093 = vmatpush1.xpose.msra.mxu0 0.0
        %1094 = vmatprep.subr.mxu0 0.0
        %1095 = vmatpush1.xpose.msra.mxu0 0.0
        %1096 = vmatprep.mubr.f32.mxu0 0.0
        %1097 = vmatmul.mubr.f32.gmra.mrb[0].mxu0 %v1028
        %v1098 = vpop.f32.mrb[0].mxu0
        %v1099 = vadd.f32 0.0, %v1098
        %v1100 = vpop.f32.mrb[0].mxu0
        %1101 = vdwg.mxu0
        %v1102 = vsel %vm937, -1e+09, %v1099
        %v1103 = vsel %vm854, %v1102, -inf
        %1104 = vmax.xlane.f32.xlu0 %v1103
        %v1105 = vpop.xlane.xlu0 %1104
        %v1106 = vsub.f32 %v1102, %v1105
        %v1107 = vmul.f32 %v1106, 1.442695
        %v1108 = vpow.pop %v1107
        %v1109 = vsel %vm854, %v1108, 0.0
        %1110 = vadd.xlane.f32.xlu0 %v1109
        %v1111 = vpop.xlane.xlu0 %1110
        %v1112 = vrcp.pop %v1111
        %v1113 = vmul.f32 %v1108, %v1112
        %s1114 = scalar_lea.vmem %s592, 8 [#allocation14]
        %1115 = vst.msk [vmem:[%s1114] sm:$0xff] %vm854, %v1113
        %1117 = vrot.lane.b32.xlu0 %v850, 120
        %v1118 = vpop.permute.xlu0 %1117
        %v1121 = vsel %vm854, %v1113, 0
        %1123 = vmatprep.subr.mxu0 0.0
        %1124 = vmatpush1.msra.mxu0 %v1118
        %1125 = vmatprep.subr.mxu0 0.0
        %1126 = vmatpush1.msra.mxu0 0.0
        %1127 = vmatprep.subr.mxu0 0.0
        %1128 = vmatpush1.msra.mxu0 0.0
        %1129 = vmatprep.subr.mxu0 0.0
        %1130 = vmatpush1.msra.mxu0 0.0
        %1131 = vmatprep.subr.mxu0 0.0
        %1132 = vmatpush1.msra.mxu0 0.0
        %1133 = vmatprep.subr.mxu0 0.0
        %1134 = vmatpush1.msra.mxu0 0.0
        %1135 = vmatprep.subr.mxu0 0.0
        %1136 = vmatpush1.msra.mxu0 0.0
        %1137 = vmatprep.subr.mxu0 0.0
        %1138 = vmatpush1.msra.mxu0 0.0
        %1139 = vmatprep.subr.mxu0 0.0
        %1140 = vmatpush1.msra.mxu0 0.0
        %1141 = vmatprep.subr.mxu0 0.0
        %1142 = vmatpush1.msra.mxu0 0.0
        %1143 = vmatprep.subr.mxu0 0.0
        %1144 = vmatpush1.msra.mxu0 0.0
        %1145 = vmatprep.subr.mxu0 0.0
        %1146 = vmatpush1.msra.mxu0 0.0
        %1147 = vmatprep.subr.mxu0 0.0
        %1148 = vmatpush1.msra.mxu0 0.0
        %1149 = vmatprep.subr.mxu0 0.0
        %1150 = vmatpush1.msra.mxu0 0.0
        %1151 = vmatprep.subr.mxu0 0.0
        %1152 = vmatpush1.msra.mxu0 0.0
        %1153 = vmatprep.subr.mxu0 0.0
        %1154 = vmatpush1.msra.mxu0 0.0
        %1155 = vmatprep.subr.mxu0 0.0
        %1156 = vmatpush1.msra.mxu0 0.0
        %1157 = vmatprep.subr.mxu0 0.0
        %1158 = vmatpush1.msra.mxu0 0.0
        %1159 = vmatprep.subr.mxu0 0.0
        %1160 = vmatpush1.msra.mxu0 0.0
        %1161 = vmatprep.subr.mxu0 0.0
        %1162 = vmatpush1.msra.mxu0 0.0
        %1163 = vmatprep.subr.mxu0 0.0
        %1164 = vmatpush1.msra.mxu0 0.0
        %1165 = vmatprep.subr.mxu0 0.0
        %1166 = vmatpush1.msra.mxu0 0.0
        %1167 = vmatprep.subr.mxu0 0.0
        %1168 = vmatpush1.msra.mxu0 0.0
        %1169 = vmatprep.subr.mxu0 0.0
        %1170 = vmatpush1.msra.mxu0 0.0
        %1171 = vmatprep.subr.mxu0 0.0
        %1172 = vmatpush1.msra.mxu0 0.0
        %1173 = vmatprep.subr.mxu0 0.0
        %1174 = vmatpush1.msra.mxu0 0.0
        %1175 = vmatprep.subr.mxu0 0.0
        %1176 = vmatpush1.msra.mxu0 0.0
        %1177 = vmatprep.subr.mxu0 0.0
        %1178 = vmatpush1.msra.mxu0 0.0
        %1179 = vmatprep.subr.mxu0 0.0
        %1180 = vmatpush1.msra.mxu0 0.0
        %1181 = vmatprep.subr.mxu0 0.0
        %1182 = vmatpush1.msra.mxu0 0.0
        %1183 = vmatprep.subr.mxu0 0.0
        %1184 = vmatpush1.msra.mxu0 0.0
        %1185 = vmatprep.subr.mxu0 0.0
        %1186 = vmatpush1.msra.mxu0 0.0
        %1187 = vmatprep.mubr.f32.mxu0 0.0
        %1188 = vmatmul.mubr.f32.gmra.mrb[0].mxu0 %v1121
        %v1189 = vpop.f32.mrb[0].mxu0
        %v1190 = vadd.f32 0.0, %v1189
        %v1191 = vpop.f32.mrb[0].mxu0
        %1192 = vdwg.mxu0
        %1193 = vrot.lane.b32.xlu0 %v853, 112
        %v1194 = vpop.permute.xlu0 %1193
        %1195 = vrot.lane.b32.xlu0 %v766, 112
        %v1196 = vpop.permute.xlu0 %1195
        %v1197 = vsel %vm854, %v1194, 0
        %v1199 = vsel %vm854, %v1196, 0
        %1201 = vmatprep.subr.mxu0 0.0
        %1202 = vmatpush1.xpose.msra.mxu0 %v1199
        %1203 = vmatprep.subr.mxu0 0.0
        %1204 = vmatpush1.xpose.msra.mxu0 0.0
        %1205 = vmatprep.subr.mxu0 0.0
        %1206 = vmatpush1.xpose.msra.mxu0 0.0
        %1207 = vmatprep.subr.mxu0 0.0
        %1208 = vmatpush1.xpose.msra.mxu0 0.0
        %1209 = vmatprep.subr.mxu0 0.0
        %1210 = vmatpush1.xpose.msra.mxu0 0.0
        %1211 = vmatprep.subr.mxu0 0.0
        %1212 = vmatpush1.xpose.msra.mxu0 0.0
        %1213 = vmatprep.subr.mxu0 0.0
        %1214 = vmatpush1.xpose.msra.mxu0 0.0
        %1215 = vmatprep.subr.mxu0 0.0
        %1216 = vmatpush1.xpose.msra.mxu0 0.0
        %1217 = vmatprep.subr.mxu0 0.0
        %1218 = vmatpush1.xpose.msra.mxu0 0.0
        %1219 = vmatprep.subr.mxu0 0.0
        %1220 = vmatpush1.xpose.msra.mxu0 0.0
        %1221 = vmatprep.subr.mxu0 0.0
        %1222 = vmatpush1.xpose.msra.mxu0 0.0
        %1223 = vmatprep.subr.mxu0 0.0
        %1224 = vmatpush1.xpose.msra.mxu0 0.0
        %1225 = vmatprep.subr.mxu0 0.0
        %1226 = vmatpush1.xpose.msra.mxu0 0.0
        %1227 = vmatprep.subr.mxu0 0.0
        %1228 = vmatpush1.xpose.msra.mxu0 0.0
        %1229 = vmatprep.subr.mxu0 0.0
        %1230 = vmatpush1.xpose.msra.mxu0 0.0
        %1231 = vmatprep.subr.mxu0 0.0
        %1232 = vmatpush1.xpose.msra.mxu0 0.0
        %1233 = vmatprep.subr.mxu0 0.0
        %1234 = vmatpush1.xpose.msra.mxu0 0.0
        %1235 = vmatprep.subr.mxu0 0.0
        %1236 = vmatpush1.xpose.msra.mxu0 0.0
        %1237 = vmatprep.subr.mxu0 0.0
        %1238 = vmatpush1.xpose.msra.mxu0 0.0
        %1239 = vmatprep.subr.mxu0 0.0
        %1240 = vmatpush1.xpose.msra.mxu0 0.0
        %1241 = vmatprep.subr.mxu0 0.0
        %1242 = vmatpush1.xpose.msra.mxu0 0.0
        %1243 = vmatprep.subr.mxu0 0.0
        %1244 = vmatpush1.xpose.msra.mxu0 0.0
        %1245 = vmatprep.subr.mxu0 0.0
        %1246 = vmatpush1.xpose.msra.mxu0 0.0
        %1247 = vmatprep.subr.mxu0 0.0
        %1248 = vmatpush1.xpose.msra.mxu0 0.0
        %1249 = vmatprep.subr.mxu0 0.0
        %1250 = vmatpush1.xpose.msra.mxu0 0.0
        %1251 = vmatprep.subr.mxu0 0.0
        %1252 = vmatpush1.xpose.msra.mxu0 0.0
        %1253 = vmatprep.subr.mxu0 0.0
        %1254 = vmatpush1.xpose.msra.mxu0 0.0
        %1255 = vmatprep.subr.mxu0 0.0
        %1256 = vmatpush1.xpose.msra.mxu0 0.0
        %1257 = vmatprep.subr.mxu0 0.0
        %1258 = vmatpush1.xpose.msra.mxu0 0.0
        %1259 = vmatprep.subr.mxu0 0.0
        %1260 = vmatpush1.xpose.msra.mxu0 0.0
        %1261 = vmatprep.subr.mxu0 0.0
        %1262 = vmatpush1.xpose.msra.mxu0 0.0
        %1263 = vmatprep.subr.mxu0 0.0
        %1264 = vmatpush1.xpose.msra.mxu0 0.0
        %1265 = vmatprep.mubr.f32.mxu0 0.0
        %1266 = vmatmul.mubr.f32.gmra.mrb[0].mxu0 %v1197
        %v1267 = vpop.f32.mrb[0].mxu0
        %v1268 = vadd.f32 0.0, %v1267
        %v1269 = vpop.f32.mrb[0].mxu0
        %1270 = vdwg.mxu0
        %v1271 = vsel %vm937, -1e+09, %v1268
        %v1272 = vsel %vm854, %v1271, -inf
        %1273 = vmax.xlane.f32.xlu0 %v1272
        %v1274 = vpop.xlane.xlu0 %1273
        %v1275 = vsub.f32 %v1271, %v1274
        %v1276 = vmul.f32 %v1275, 1.442695
        %v1277 = vpow.pop %v1276
        %v1278 = vsel %vm854, %v1277, 0.0
        %1279 = vadd.xlane.f32.xlu0 %v1278
        %v1280 = vpop.xlane.xlu0 %1279
        %v1281 = vrcp.pop %v1280
        %v1282 = vmul.f32 %v1277, %v1281
        %s1283 = scalar_lea.vmem %s592, 16 [#allocation14]
        %1284 = vst.msk [vmem:[%s1283] sm:$0xff] %vm854, %v1282
        %1285 = vrot.lane.b32.xlu0 %v850, 112
        %v1286 = vpop.permute.xlu0 %1285
        %v1289 = vsel %vm854, %v1282, 0
        %1291 = vmatprep.subr.mxu0 0.0
        %1292 = vmatpush1.msra.mxu0 %v1286
        %1293 = vmatprep.subr.mxu0 0.0
        %1294 = vmatpush1.msra.mxu0 0.0
        %1295 = vmatprep.subr.mxu0 0.0
        %1296 = vmatpush1.msra.mxu0 0.0
        %1297 = vmatprep.subr.mxu0 0.0
        %1298 = vmatpush1.msra.mxu0 0.0
        %1299 = vmatprep.subr.mxu0 0.0
        %1300 = vmatpush1.msra.mxu0 0.0
        %1301 = vmatprep.subr.mxu0 0.0
        %1302 = vmatpush1.msra.mxu0 0.0
        %1303 = vmatprep.subr.mxu0 0.0
        %1304 = vmatpush1.msra.mxu0 0.0
        %1305 = vmatprep.subr.mxu0 0.0
        %1306 = vmatpush1.msra.mxu0 0.0
        %1307 = vmatprep.subr.mxu0 0.0
        %1308 = vmatpush1.msra.mxu0 0.0
        %1309 = vmatprep.subr.mxu0 0.0
        %1310 = vmatpush1.msra.mxu0 0.0
        %1311 = vmatprep.subr.mxu0 0.0
        %1312 = vmatpush1.msra.mxu0 0.0
        %1313 = vmatprep.subr.mxu0 0.0
        %1314 = vmatpush1.msra.mxu0 0.0
        %1315 = vmatprep.subr.mxu0 0.0
        %1316 = vmatpush1.msra.mxu0 0.0
        %1317 = vmatprep.subr.mxu0 0.0
        %1318 = vmatpush1.msra.mxu0 0.0
        %1319 = vmatprep.subr.mxu0 0.0
        %1320 = vmatpush1.msra.mxu0 0.0
        %1321 = vmatprep.subr.mxu0 0.0
        %1322 = vmatpush1.msra.mxu0 0.0
        %1323 = vmatprep.subr.mxu0 0.0
        %1324 = vmatpush1.msra.mxu0 0.0
        %1325 = vmatprep.subr.mxu0 0.0
        %1326 = vmatpush1.msra.mxu0 0.0
        %1327 = vmatprep.subr.mxu0 0.0
        %1328 = vmatpush1.msra.mxu0 0.0
        %1329 = vmatprep.subr.mxu0 0.0
        %1330 = vmatpush1.msra.mxu0 0.0
        %1331 = vmatprep.subr.mxu0 0.0
        %1332 = vmatpush1.msra.mxu0 0.0
        %1333 = vmatprep.subr.mxu0 0.0
        %1334 = vmatpush1.msra.mxu0 0.0
        %1335 = vmatprep.subr.mxu0 0.0
        %1336 = vmatpush1.msra.mxu0 0.0
        %1337 = vmatprep.subr.mxu0 0.0
        %1338 = vmatpush1.msra.mxu0 0.0
        %1339 = vmatprep.subr.mxu0 0.0
        %1340 = vmatpush1.msra.mxu0 0.0
        %1341 = vmatprep.subr.mxu0 0.0
        %1342 = vmatpush1.msra.mxu0 0.0
        %1343 = vmatprep.subr.mxu0 0.0
        %1344 = vmatpush1.msra.mxu0 0.0
        %1345 = vmatprep.subr.mxu0 0.0
        %1346 = vmatpush1.msra.mxu0 0.0
        %1347 = vmatprep.subr.mxu0 0.0
        %1348 = vmatpush1.msra.mxu0 0.0
        %1349 = vmatprep.subr.mxu0 0.0
        %1350 = vmatpush1.msra.mxu0 0.0
        %1351 = vmatprep.subr.mxu0 0.0
        %1352 = vmatpush1.msra.mxu0 0.0
        %1353 = vmatprep.subr.mxu0 0.0
        %1354 = vmatpush1.msra.mxu0 0.0
        %1355 = vmatprep.mubr.f32.mxu0 0.0
        %1356 = vmatmul.mubr.f32.gmra.mrb[0].mxu0 %v1289
        %v1357 = vpop.f32.mrb[0].mxu0
        %v1358 = vadd.f32 0.0, %v1357
        %v1359 = vpop.f32.mrb[0].mxu0
        %1360 = vdwg.mxu0
        %1361 = vrot.lane.b32.xlu0 %v853, 104
        %v1362 = vpop.permute.xlu0 %1361
        %1363 = vrot.lane.b32.xlu0 %v766, 104
        %v1364 = vpop.permute.xlu0 %1363
        %v1365 = vsel %vm854, %v1362, 0
        %v1367 = vsel %vm854, %v1364, 0
        %1369 = vmatprep.subr.mxu0 0.0
        %1370 = vmatpush1.xpose.msra.mxu0 %v1367
        %1371 = vmatprep.subr.mxu0 0.0
        %1372 = vmatpush1.xpose.msra.mxu0 0.0
        %1373 = vmatprep.subr.mxu0 0.0
        %1374 = vmatpush1.xpose.msra.mxu0 0.0
        %1375 = vmatprep.subr.mxu0 0.0
        %1376 = vmatpush1.xpose.msra.mxu0 0.0
        %1377 = vmatprep.subr.mxu0 0.0
        %1378 = vmatpush1.xpose.msra.mxu0 0.0
        %1379 = vmatprep.subr.mxu0 0.0
        %1380 = vmatpush1.xpose.msra.mxu0 0.0
        %1381 = vmatprep.subr.mxu0 0.0
        %1382 = vmatpush1.xpose.msra.mxu0 0.0
        %1383 = vmatprep.subr.mxu0 0.0
        %1384 = vmatpush1.xpose.msra.mxu0 0.0
        %1385 = vmatprep.subr.mxu0 0.0
        %1386 = vmatpush1.xpose.msra.mxu0 0.0
        %1387 = vmatprep.subr.mxu0 0.0
        %1388 = vmatpush1.xpose.msra.mxu0 0.0
        %1389 = vmatprep.subr.mxu0 0.0
        %1390 = vmatpush1.xpose.msra.mxu0 0.0
        %1391 = vmatprep.subr.mxu0 0.0
        %1392 = vmatpush1.xpose.msra.mxu0 0.0
        %1393 = vmatprep.subr.mxu0 0.0
        %1394 = vmatpush1.xpose.msra.mxu0 0.0
        %1395 = vmatprep.subr.mxu0 0.0
        %1396 = vmatpush1.xpose.msra.mxu0 0.0
        %1397 = vmatprep.subr.mxu0 0.0
        %1398 = vmatpush1.xpose.msra.mxu0 0.0
        %1399 = vmatprep.subr.mxu0 0.0
        %1400 = vmatpush1.xpose.msra.mxu0 0.0
        %1401 = vmatprep.subr.mxu0 0.0
        %1402 = vmatpush1.xpose.msra.mxu0 0.0
        %1403 = vmatprep.subr.mxu0 0.0
        %1404 = vmatpush1.xpose.msra.mxu0 0.0
        %1405 = vmatprep.subr.mxu0 0.0
        %1406 = vmatpush1.xpose.msra.mxu0 0.0
        %1407 = vmatprep.subr.mxu0 0.0
        %1408 = vmatpush1.xpose.msra.mxu0 0.0
        %1409 = vmatprep.subr.mxu0 0.0
        %1410 = vmatpush1.xpose.msra.mxu0 0.0
        %1411 = vmatprep.subr.mxu0 0.0
        %1412 = vmatpush1.xpose.msra.mxu0 0.0
        %1413 = vmatprep.subr.mxu0 0.0
        %1414 = vmatpush1.xpose.msra.mxu0 0.0
        %1415 = vmatprep.subr.mxu0 0.0
        %1416 = vmatpush1.xpose.msra.mxu0 0.0
        %1417 = vmatprep.subr.mxu0 0.0
        %1418 = vmatpush1.xpose.msra.mxu0 0.0
        %1419 = vmatprep.subr.mxu0 0.0
        %1420 = vmatpush1.xpose.msra.mxu0 0.0
        %1421 = vmatprep.subr.mxu0 0.0
        %1422 = vmatpush1.xpose.msra.mxu0 0.0
        %1423 = vmatprep.subr.mxu0 0.0
        %1424 = vmatpush1.xpose.msra.mxu0 0.0
        %1425 = vmatprep.subr.mxu0 0.0
        %1426 = vmatpush1.xpose.msra.mxu0 0.0
        %1427 = vmatprep.subr.mxu0 0.0
        %1428 = vmatpush1.xpose.msra.mxu0 0.0
        %1429 = vmatprep.subr.mxu0 0.0
        %1430 = vmatpush1.xpose.msra.mxu0 0.0
        %1431 = vmatprep.subr.mxu0 0.0
        %1432 = vmatpush1.xpose.msra.mxu0 0.0
        %1433 = vmatprep.mubr.f32.mxu0 0.0
        %1434 = vmatmul.mubr.f32.gmra.mrb[0].mxu0 %v1365
        %v1435 = vpop.f32.mrb[0].mxu0
        %v1436 = vadd.f32 0.0, %v1435
        %v1437 = vpop.f32.mrb[0].mxu0
        %1438 = vdwg.mxu0
        %v1439 = vsel %vm937, -1e+09, %v1436
        %v1440 = vsel %vm854, %v1439, -inf
        %1441 = vmax.xlane.f32.xlu0 %v1440
        %v1442 = vpop.xlane.xlu0 %1441
        %v1443 = vsub.f32 %v1439, %v1442
        %v1444 = vmul.f32 %v1443, 1.442695
        %v1445 = vpow.pop %v1444
        %v1446 = vsel %vm854, %v1445, 0.0
        %1447 = vadd.xlane.f32.xlu0 %v1446
        %v1448 = vpop.xlane.xlu0 %1447
        %v1449 = vrcp.pop %v1448
        %v1450 = vmul.f32 %v1445, %v1449
        %s1451 = scalar_lea.vmem %s592, 24 [#allocation14]
        %1452 = vst.msk [vmem:[%s1451] sm:$0xff] %vm854, %v1450
        %1453 = vrot.lane.b32.xlu0 %v850, 104
        %v1454 = vpop.permute.xlu0 %1453
        %v1457 = vsel %vm854, %v1450, 0
        %1459 = vmatprep.subr.mxu0 0.0
        %1460 = vmatpush1.msra.mxu0 %v1454
        %1461 = vmatprep.subr.mxu0 0.0
        %1462 = vmatpush1.msra.mxu0 0.0
        %1463 = vmatprep.subr.mxu0 0.0
        %1464 = vmatpush1.msra.mxu0 0.0
        %1465 = vmatprep.subr.mxu0 0.0
        %1466 = vmatpush1.msra.mxu0 0.0
        %1467 = vmatprep.subr.mxu0 0.0
        %1468 = vmatpush1.msra.mxu0 0.0
        %1469 = vmatprep.subr.mxu0 0.0
        %1470 = vmatpush1.msra.mxu0 0.0
        %1471 = vmatprep.subr.mxu0 0.0
        %1472 = vmatpush1.msra.mxu0 0.0
        %1473 = vmatprep.subr.mxu0 0.0
        %1474 = vmatpush1.msra.mxu0 0.0
        %1475 = vmatprep.subr.mxu0 0.0
        %1476 = vmatpush1.msra.mxu0 0.0
        %1477 = vmatprep.subr.mxu0 0.0
        %1478 = vmatpush1.msra.mxu0 0.0
        %1479 = vmatprep.subr.mxu0 0.0
        %1480 = vmatpush1.msra.mxu0 0.0
        %1481 = vmatprep.subr.mxu0 0.0
        %1482 = vmatpush1.msra.mxu0 0.0
        %1483 = vmatprep.subr.mxu0 0.0
        %1484 = vmatpush1.msra.mxu0 0.0
        %1485 = vmatprep.subr.mxu0 0.0
        %1486 = vmatpush1.msra.mxu0 0.0
        %1487 = vmatprep.subr.mxu0 0.0
        %1488 = vmatpush1.msra.mxu0 0.0
        %1489 = vmatprep.subr.mxu0 0.0
        %1490 = vmatpush1.msra.mxu0 0.0
        %1491 = vmatprep.subr.mxu0 0.0
        %1492 = vmatpush1.msra.mxu0 0.0
        %1493 = vmatprep.subr.mxu0 0.0
        %1494 = vmatpush1.msra.mxu0 0.0
        %1495 = vmatprep.subr.mxu0 0.0
        %1496 = vmatpush1.msra.mxu0 0.0
        %1497 = vmatprep.subr.mxu0 0.0
        %1498 = vmatpush1.msra.mxu0 0.0
        %1499 = vmatprep.subr.mxu0 0.0
        %1500 = vmatpush1.msra.mxu0 0.0
        %1501 = vmatprep.subr.mxu0 0.0
        %1502 = vmatpush1.msra.mxu0 0.0
        %1503 = vmatprep.subr.mxu0 0.0
        %1504 = vmatpush1.msra.mxu0 0.0
        %1505 = vmatprep.subr.mxu0 0.0
        %1506 = vmatpush1.msra.mxu0 0.0
        %1507 = vmatprep.subr.mxu0 0.0
        %1508 = vmatpush1.msra.mxu0 0.0
        %1509 = vmatprep.subr.mxu0 0.0
        %1510 = vmatpush1.msra.mxu0 0.0
        %1511 = vmatprep.subr.mxu0 0.0
        %1512 = vmatpush1.msra.mxu0 0.0
        %1513 = vmatprep.subr.mxu0 0.0
        %1514 = vmatpush1.msra.mxu0 0.0
        %1515 = vmatprep.subr.mxu0 0.0
        %1516 = vmatpush1.msra.mxu0 0.0
        %1517 = vmatprep.subr.mxu0 0.0
        %1518 = vmatpush1.msra.mxu0 0.0
        %1519 = vmatprep.subr.mxu0 0.0
        %1520 = vmatpush1.msra.mxu0 0.0
        %1521 = vmatprep.subr.mxu0 0.0
        %1522 = vmatpush1.msra.mxu0 0.0
        %1523 = vmatprep.mubr.f32.mxu0 0.0
        %1524 = vmatmul.mubr.f32.gmra.mrb[0].mxu0 %v1457
        %v1525 = vpop.f32.mrb[0].mxu0
        %v1526 = vadd.f32 0.0, %v1525
        %v1527 = vpop.f32.mrb[0].mxu0
        %1528 = vdwg.mxu0
        %1530 = vrot.lane.b32.xlu0 %v1190, 8
        %v1531 = vpop.permute.xlu0 %1530
        %1534 = vrot.lane.b32.xlu0 %v1358, 16
        %v1535 = vpop.permute.xlu0 %1534
        %1538 = vrot.lane.b32.xlu0 %v1526, 24
        %v1539 = vpop.permute.xlu0 %1538
        %v1541 = vsel %vm854, %v1021, %v1531
        %vm1542 = vcmask 130048
        %v1543 = vsel %vm1542, %v1541, %v1535
        %vm1544 = vcmask 195584
        %v1545 = vsel %vm1544, %v1543, %v1539
        %v1546 = vld [vmem:[#allocation11] sm:$0xff]
        %v1547 = vld [vmem:[#allocation11 + $0x8] sm:$0xff]
        %v1548 = vld [vmem:[#allocation11 + $0x10] sm:$0xff]
        %v1549 = vld [vmem:[#allocation11 + $0x18] sm:$0xff]
        %v1550 = vld [vmem:[%s11] sm:$0x1]
        %v1552 = vlaneseq
        %v1553 = vshrl.u32 %v1552, 7
        %v1554 = vsub.s32 0, %v1553
        %v1555 = vrot.slane %v1550, %v1554
        %v1558 = vsel %vm611, %v1545, 0
        %1560 = vmatprep.subr.mxu0 0.0
        %1561 = vmatpush1.msra.mxu0 %v1546
        %1562 = vmatprep.subr.mxu0 0.0
        %1563 = vmatpush1.msra.mxu0 %v1547
        %1564 = vmatprep.subr.mxu0 0.0
        %1565 = vmatpush1.msra.mxu0 %v1548
        %1566 = vmatprep.subr.mxu0 0.0
        %1567 = vmatpush1.msra.mxu0 %v1549
        %1568 = vmatprep.subr.mxu0 0.0
        %1569 = vmatpush1.msra.mxu0 0.0
        %1570 = vmatprep.subr.mxu0 0.0
        %1571 = vmatpush1.msra.mxu0 0.0
        %1572 = vmatprep.subr.mxu0 0.0
        %1573 = vmatpush1.msra.mxu0 0.0
        %1574 = vmatprep.subr.mxu0 0.0
        %1575 = vmatpush1.msra.mxu0 0.0
        %1576 = vmatprep.subr.mxu0 0.0
        %1577 = vmatpush1.msra.mxu0 0.0
        %1578 = vmatprep.subr.mxu0 0.0
        %1579 = vmatpush1.msra.mxu0 0.0
        %1580 = vmatprep.subr.mxu0 0.0
        %1581 = vmatpush1.msra.mxu0 0.0
        %1582 = vmatprep.subr.mxu0 0.0
        %1583 = vmatpush1.msra.mxu0 0.0
        %1584 = vmatprep.subr.mxu0 0.0
        %1585 = vmatpush1.msra.mxu0 0.0
        %1586 = vmatprep.subr.mxu0 0.0
        %1587 = vmatpush1.msra.mxu0 0.0
        %1588 = vmatprep.subr.mxu0 0.0
        %1589 = vmatpush1.msra.mxu0 0.0
        %1590 = vmatprep.subr.mxu0 0.0
        %1591 = vmatpush1.msra.mxu0 0.0
        %1592 = vmatprep.subr.mxu0 0.0
        %1593 = vmatpush1.msra.mxu0 0.0
        %1594 = vmatprep.subr.mxu0 0.0
        %1595 = vmatpush1.msra.mxu0 0.0
        %1596 = vmatprep.subr.mxu0 0.0
        %1597 = vmatpush1.msra.mxu0 0.0
        %1598 = vmatprep.subr.mxu0 0.0
        %1599 = vmatpush1.msra.mxu0 0.0
        %1600 = vmatprep.subr.mxu0 0.0
        %1601 = vmatpush1.msra.mxu0 0.0
        %1602 = vmatprep.subr.mxu0 0.0
        %1603 = vmatpush1.msra.mxu0 0.0
        %1604 = vmatprep.subr.mxu0 0.0
        %1605 = vmatpush1.msra.mxu0 0.0
        %1606 = vmatprep.subr.mxu0 0.0
        %1607 = vmatpush1.msra.mxu0 0.0
        %1608 = vmatprep.subr.mxu0 0.0
        %1609 = vmatpush1.msra.mxu0 0.0
        %1610 = vmatprep.subr.mxu0 0.0
        %1611 = vmatpush1.msra.mxu0 0.0
        %1612 = vmatprep.subr.mxu0 0.0
        %1613 = vmatpush1.msra.mxu0 0.0
        %1614 = vmatprep.subr.mxu0 0.0
        %1615 = vmatpush1.msra.mxu0 0.0
        %1616 = vmatprep.subr.mxu0 0.0
        %1617 = vmatpush1.msra.mxu0 0.0
        %1618 = vmatprep.subr.mxu0 0.0
        %1619 = vmatpush1.msra.mxu0 0.0
        %1620 = vmatprep.subr.mxu0 0.0
        %1621 = vmatpush1.msra.mxu0 0.0
        %1622 = vmatprep.subr.mxu0 0.0
        %1623 = vmatpush1.msra.mxu0 0.0
        %1624 = vmatprep.mubr.f32.mxu0 0.0
        %1625 = vmatmul.mubr.f32.gmra.mrb[0].mxu0 %v1558
        %v1626 = vpop.f32.mrb[0].mxu0
        %v1627 = vadd.f32 %v1555, %v1626
        %v1628 = vpop.f32.mrb[0].mxu0
        %1629 = vdwg.mxu0
        %1630 = vst.msk [vmem:[%s585] sm:$0xff] %vm611, %v1627
        %s1631 = sand.u32 %s319, 1
        %s1632 = scalar_lea.sflag [#allocation4], %s1631
        %s1633 = sand.u32 %s319, 1
        %s1634 = smul.addr %s1633, 8
        %s1635 = scalar_lea.vmem [#allocation13], %s1634
        %s1636 = sand.u32 %s345, 1
        %s1637 = scalar_lea.sflag [#allocation15], %s1636
        %s1638 = sand.u32 %s345, 1
        %s1639 = smul.addr %s1638, 32
        %s1640 = scalar_lea.vmem [#allocation14], %s1639
        // Predicated region
        $region93: #{multi_headed_attention.1} parent=67 // pred_check
          %p1641 = pneg %p329
        $region94: #{multi_headed_attention.1} parent=67 // pred_check_branch
          %1643 = sbr.rel (%p1641) target = $region96
        $region95: #{multi_headed_attention.1} parent=67 // pred_region
          %s1645 = ssub.s32 128, 128
          %1646 = vsyncadd %s1632, %s1645
          %s1647 = smul.addr %s39, 128
          %s1648 = scalar_lea.hbm %s12, %s1647
          %s1650 = sshll.u32 %s1635, 4
          %s1651 = int_to_ptr.vmem [resolvable:$true] %s1650
          %1653 = dma.vmem_to_hbm [thread:$0]  %s1651, 128, %s1648, %s1632
        $region96: #{multi_headed_attention.1} parent=67 // pred_fallthru
          _
        // Predicated region
        $region97: #{multi_headed_attention.1} parent=67 // pred_check
          %p1654 = pneg %p355
        $region98: #{multi_headed_attention.1} parent=67 // pred_check_branch
          %1656 = sbr.rel (%p1654) target = $region100
        $region99: #{multi_headed_attention.1} parent=67 // pred_region
          %s1658 = ssub.s32 512, 512
          %1659 = vsyncadd %s1637, %s1658
          %s1660 = smul.addr %s39, 4
          %s1661 = smul.addr %s1660, 128
          %s1662 = scalar_lea.hbm %s13, %s1661
          %s1663 = sshll.u32 %s1640, 4
          %s1664 = int_to_ptr.vmem [resolvable:$true] %s1663
          %1669 = dma.vmem_to_hbm [thread:$0]  %s1664, 512, %s1662, %s1637, 128, 128, 8
        $region100: #{multi_headed_attention.1} parent=67 // pred_fallthru
          _
      $region68: #{multi_headed_attention.1} parent=5 // pred_fallthru
        _
      %p1670 = scmp.le.s32.totalorder 2, %s34
      // Predicated region
      $region101: #{multi_headed_attention.1} parent=5 // pred_check
        %p1671 = pneg %p1670
      $region102: #{multi_headed_attention.1} parent=5 // pred_check_branch
        %1673 = sbr.rel (%p1671) target = $region104
      $region103: #{multi_headed_attention.1} parent=5 // pred_region
        %s1674 = ssub.s32 %s34, 2
        // Predicated region
        $region105: #{multi_headed_attention.1} parent=103 // pred_check
          %p1675 = pneg %p335
        $region106: #{multi_headed_attention.1} parent=103 // pred_check_branch
          %1677 = sbr.rel (%p1675) target = $region108
        $region107: #{multi_headed_attention.1} parent=103 // pred_region
          %s1678 = sand.u32 %s320, 1
          %s1679 = scalar_lea.sflag [#allocation4], %s1678
          %s1680 = sand.u32 %s320, 1
          %s1681 = smul.addr %s1680, 8
          %s1682 = scalar_lea.vmem [#allocation13], %s1681
          %1683 = dma.done %s1679, 128
        $region108: #{multi_headed_attention.1} parent=103 // pred_fallthru
          _
        // Predicated region
        $region109: #{multi_headed_attention.1} parent=103 // pred_check
          %p1684 = pneg %p361
        $region110: #{multi_headed_attention.1} parent=103 // pred_check_branch
          %1686 = sbr.rel (%p1684) target = $region112
        $region111: #{multi_headed_attention.1} parent=103 // pred_region
          %s1687 = sand.u32 %s346, 1
          %s1688 = scalar_lea.sflag [#allocation15], %s1687
          %s1689 = sand.u32 %s346, 1
          %s1690 = smul.addr %s1689, 32
          %s1691 = scalar_lea.vmem [#allocation14], %s1690
          %1692 = dma.done %s1688, 512
        $region112: #{multi_headed_attention.1} parent=103 // pred_fallthru
          _
      $region104: #{multi_headed_attention.1} parent=5 // pred_fallthru
        _
    $region6: #{multi_headed_attention.1} parent=1 // loop_footer
      %s38 = sadd.s32 1, %s34
    $region7: #{multi_headed_attention.1} parent=1 // loop_footer_branch
      %33 = sbr.rel target = $region3
    $region8: #{multi_headed_attention.1} parent=1 // loop_exit
      _
    %1693 = vsyncpa [#allocation3], 1
    %s1694 = scalar_lea.sflag [#allocation3], 1
    %1695 = vsyncpa %s1694, 1
    %1696 = vsyncpa [#allocation6], 1
    %s1697 = scalar_lea.sflag [#allocation6], 1
    %1698 = vsyncpa %s1697, 1
    %1699 = vsyncpa [#allocation9], 1
    %1700 = vsyncpa [#allocation12], 1
    %1701 = vsyncpa [#allocation4], 1
    %s1702 = scalar_lea.sflag [#allocation4], 1
    %1703 = vsyncpa %s1702, 1
    %1704 = vsyncpa [#allocation15], 1
    %s1705 = scalar_lea.sflag [#allocation15], 1
    %1706 = vsyncpa %s1705, 1

</llo_original>
